<compile_context>
chip_gen: v5e
topology: v5e:2x2
jax: 0.10.0
libtpu: 0.0.40
codegen_flags: <defaults>
</compile_context>

<pallas_src>
import jax
import jax.numpy as jnp
from jax import lax
from jax.experimental import pallas as pl
from jax.experimental.pallas import tpu as pltpu

# ---- hyper-parameters (small synthetic sizes consistent with the module) ----
N_PED = 16          # number of pedestrians
T_OBS = 8           # hyper_params.obs_len
T_PRED = 12         # hyper_params.pred_len
K = 6               # hyper_params.k
S = 8               # hyper_params.num_samples
DIM = 2             # hyper_params.traj_dim
HIDDEN = 32         # synthetic baseline hidden width
STATIC_DIST = 0.3   # hyper_params.static_dist


def _dot(a, b):
    return jnp.dot(a, b, preferred_element_type=jnp.float32)


def singular_trajectory_kernel(
    # inputs (packed host-side)
    obs_xy_ref,        # (2, N, T_OBS)
    pred_tiled_ref,    # (2, N, S*T_PRED)           ground-truth pred tiled over samples
    anchor_ref,        # (N, S*K)
    proj_rhs_ref,      # (2*(T_OBS+T_PRED), 4*K)    block-diag fused obs/pred, m/s projection
    recon_rhs_ref,     # (4, S*K, S*T_PRED)         block-diag V_pred^T planes (xm, ym, xs, ys)
    w1_aug_ref,        # (K+3, HIDDEN)              [W1c; W1o; b1]
    w2_aug_ref,        # (HIDDEN+1, S*K)            0.1*[W2_flat; b2_flat]
    tile_k_ref,        # (K, S*K)                   [I_K | I_K | ...]  (tile C_gt over samples)
    g_eig_ref,         # (S*K, S)                   per-sample group-sum over k
    g_af_ref,          # (S*T_PRED, 2*S)            [per-sample mean over t | last-t selector]
    # outputs
    recon_ref,         # (2, N, S*T_PRED)
    losses_ref,        # (1, 3)                     [eigentraj, ade, fde]
):
    f32 = jnp.float32
    obs_x = obs_xy_ref[0]
    obs_y = obs_xy_ref[1]
    px_t = pred_tiled_ref[0]                                 # (N, S*T_PRED), reused for losses
    py_t = pred_tiled_ref[1]
    pred_x = px_t[:, :T_PRED]                                # lane-0 aligned slice = pred gt
    pred_y = py_t[:, :T_PRED]

    # ---------------- calculate_mask + TrajNorm.calculate_params ----------------
    dx = obs_x[:, -1:] - obs_x[:, -3:-2]                     # (N, 1)
    dy = obs_y[:, -1:] - obs_y[:, -3:-2]
    rr = dx * dx + dy * dy
    mask = rr > (2.0 * STATIC_DIST) ** 2                     # moving peds; dist = 0.5*sqrt(rr)

    inv_r = lax.rsqrt(jnp.maximum(rr, 1e-12))                # EUP rsqrt, no divides
    degenerate = rr < 1e-12                                  # atan2(0,0) == 0 semantics
    c = jnp.where(degenerate, 1.0, dx * inv_r)               # cos(theta)
    s = jnp.where(degenerate, 0.0, dy * inv_r)               # sin(theta)
    sca = 2.0 * inv_r                                        # traj_sca (m-space only)
    inv_sca = 0.5 * rr * inv_r                               # r/2 == 1/sca

    ori_x = obs_x[:, -1:]                                    # traj_ori
    ori_y = obs_y[:, -1:]

    # ---------------- normalize obs / pred-gt, single fused projection ----------------
    ox = obs_x - ori_x
    oy = obs_y - ori_y
    rx = ox * c + oy * s                                     # traj @ R(-theta)
    ry = -ox * s + oy * c
    pxn = pred_x - ori_x
    pyn = pred_y - ori_y
    prx = pxn * c + pyn * s
    pry = -pxn * s + pyn * c

    proj = _dot(jnp.concatenate([rx, ry, prx, pry], axis=-1), proj_rhs_ref[...])   # (N, 4K)
    C_obs = jnp.where(mask, sca * proj[:, :K], proj[:, K:2 * K])                   # (N, K)
    C_gt = jnp.where(mask, sca * proj[:, 2 * K:3 * K], proj[:, 3 * K:])            # (N, K)

    # ---------------- centered origins (obs_ori -= mean) ----------------
    cx = ori_x - jnp.mean(ori_x)
    cy = ori_y - jnp.mean(ori_y)

    # ---------------- synthetic baseline bridge (2-layer MLP), all samples at once ----------------
    ones = jnp.ones((N_PED, 1), f32)
    h = jnp.maximum(
        _dot(jnp.concatenate([C_obs, cx, cy, ones], axis=-1), w1_aug_ref[...]), 0.0)   # (N, H)
    resid = _dot(jnp.concatenate([h, ones], axis=-1), w2_aug_ref[...])                 # (N, S*K), *0.1 folded
    # AdaptiveAnchor.forward: C_pred = C_anchor + C_residual (all samples)
    C_all = anchor_ref[...] + resid                                                    # (N, S*K)

    # ---------------- batched reconstruction: 4 block-diagonal matmuls ----------------
    XM = _dot(C_all, recon_rhs_ref[0])                       # (N, S*T_PRED)
    YM = _dot(C_all, recon_rhs_ref[1])
    XS = _dot(C_all, recon_rhs_ref[2])
    YS = _dot(C_all, recon_rhs_ref[3])

    c_m = c * inv_sca                                        # fold /sca into the rotation
    s_m = s * inv_sca
    xm2 = XM * c_m - YM * s_m + ori_x                        # m-space denormalize
    ym2 = XM * s_m + YM * c_m + ori_y
    xs2 = XS * c - YS * s + ori_x                            # s-space denormalize
    ys2 = XS * s + YS * c + ori_y

    rx_all = jnp.where(mask, xm2, xs2)                       # (N, S*T_PRED)
    ry_all = jnp.where(mask, ym2, ys2)
    recon_ref[0] = rx_all                                    # lane-dense full-tile stores
    recon_ref[1] = ry_all

    # ---------------- losses ----------------
    # loss_eigentraj: min_s ||C_pred - C_pred_gt||_2 (sqrt deferred outside the min).
    # C_gt tiled over samples via one tiny MXU matmul (replaces an 8-way lane concat).
    diff = C_all - _dot(C_gt, tile_k_ref[...])               # (N, S*K)
    errsq = _dot(diff * diff, g_eig_ref[...])                # (N, S)
    loss_eig = jnp.mean(jnp.sqrt(jnp.min(errsq, axis=-1, keepdims=True)), keepdims=True)

    # displacement errors vs ground truth (all samples in lanes)
    ex = rx_all - px_t
    ey = ry_all - py_t
    disp = jnp.sqrt(ex * ex + ey * ey)                       # (N, S*T_PRED)
    stats = _dot(disp, g_af_ref[...])                        # (N, 2S): [ADE means | FDE last-t]
    loss_ade = jnp.mean(jnp.min(stats[:, :S], axis=-1, keepdims=True), keepdims=True)
    loss_fde = jnp.mean(jnp.min(stats[:, S:], axis=-1, keepdims=True), keepdims=True)

    losses_ref[...] = jnp.concatenate([loss_eig, loss_ade, loss_fde], axis=-1)   # (1, 3)


def make_params():
    """Deterministic parameter init (shapes follow SingularSpace / synthetic bridge)."""
    f32 = jnp.float32
    ks = jax.random.split(jax.random.PRNGKey(42), 9)
    return {
        "V_obs_m":  (0.3 * jax.random.normal(ks[0], (T_OBS * DIM, K))).astype(f32),
        "V_pred_m": (0.3 * jax.random.normal(ks[1], (T_PRED * DIM, K))).astype(f32),
        "V_obs_s":  (0.3 * jax.random.normal(ks[2], (T_OBS * DIM, K))).astype(f32),
        "V_pred_s": (0.3 * jax.random.normal(ks[3], (T_PRED * DIM, K))).astype(f32),
        "W1c": (0.2 * jax.random.normal(ks[4], (K, HIDDEN))).astype(f32),
        "W1o": (0.2 * jax.random.normal(ks[5], (2, HIDDEN))).astype(f32),
        "b1":  (0.1 * jax.random.normal(ks[6], (1, HIDDEN))).astype(f32),
        "W2":  (0.2 * jax.random.normal(ks[7], (S, HIDDEN, K))).astype(f32),
        "b2T": (0.1 * jax.random.normal(ks[8], (S, K))).astype(f32),
    }


def _split_xy(v):  # torch reshape(-1, t*dim) interleaves [x0, y0, x1, y1, ...]
    return v[0::2, :], v[1::2, :]


def singular_trajectory_forward(obs_traj, adaptive_anchor, pred_traj, params):
    """Glue: layout plumbing + constant-slab packing; all hot-path compute is in the kernel."""
    f32 = jnp.float32

    obs_xy = jnp.transpose(obs_traj.astype(f32), (2, 0, 1))            # (2, N, T_OBS)
    pred_xy = jnp.transpose(pred_traj.astype(f32), (2, 0, 1))          # (2, N, T_PRED)
    pred_xy_tiled = jnp.tile(pred_xy, (1, 1, S))                       # (2, N, S*T_PRED)
    anchor_flat = jnp.transpose(adaptive_anchor.astype(f32), (0, 2, 1)).reshape(N_PED, S * K)

    vomx, vomy = _split_xy(params["V_obs_m"])
    vosx, vosy = _split_xy(params["V_obs_s"])
    vpmx, vpmy = _split_xy(params["V_pred_m"])
    vpsx, vpsy = _split_xy(params["V_pred_s"])

    proj_obs_rhs = jnp.block([[vomx, vosx], [vomy, vosy]])             # (2*T_OBS, 2K)
    proj_pred_rhs = jnp.block([[vpmx, vpsx], [vpmy, vpsy]])            # (2*T_PRED, 2K)
    proj_rhs = jnp.block([                                             # block-diag (40, 4K)
        [proj_obs_rhs, jnp.zeros((2 * T_OBS, 2 * K), f32)],
        [jnp.zeros((2 * T_PRED, 2 * K), f32), proj_pred_rhs]])

    eye_s = jnp.eye(S, dtype=f32)
    recon_rhs = jnp.stack([                                            # (4, S*K, S*T_PRED)
        jnp.kron(eye_s, vpmx.T), jnp.kron(eye_s, vpmy.T),
        jnp.kron(eye_s, vpsx.T), jnp.kron(eye_s, vpsy.T)], axis=0)

    w1_aug = jnp.concatenate([params["W1c"], params["W1o"], params["b1"]], axis=0)   # (K+3, H)
    w2_flat = jnp.transpose(params["W2"], (1, 0, 2)).reshape(HIDDEN, S * K)
    w2_aug = 0.1 * jnp.concatenate([w2_flat, params["b2T"].reshape(1, S * K)], axis=0)  # (H+1, S*K)

    tile_k = jnp.tile(jnp.eye(K, dtype=f32), (1, S))                   # (K, S*K)
    g_eig = jnp.kron(eye_s, jnp.ones((K, 1), f32))                     # (S*K, S)
    g_ade = jnp.kron(eye_s, jnp.full((T_PRED, 1), 1.0 / T_PRED, f32))  # (S*T_PRED, S)
    e_last = jnp.zeros((T_PRED, 1), f32).at[-1, 0].set(1.0)
    g_fde = jnp.kron(eye_s, e_last)                                    # (S*T_PRED, S)
    g_af = jnp.concatenate([g_ade, g_fde], axis=1)                     # (S*T_PRED, 2S)

    inputs = [
        obs_xy, pred_xy_tiled, anchor_flat,
        proj_rhs, recon_rhs,
        w1_aug, w2_aug, tile_k, g_eig, g_af,
    ]

    out_shapes = (
        jax.ShapeDtypeStruct((2, N_PED, S * T_PRED), f32),   # recon x/y planes (lane-dense)
        jax.ShapeDtypeStruct((1, 3), f32),                   # [loss_eig, loss_ade, loss_fde]
    )

    recon, losses = pl.pallas_call(
        singular_trajectory_kernel,
        out_shape=out_shapes,
        in_specs=[pl.BlockSpec(memory_space=pltpu.MemorySpace.VMEM) for _ in inputs],
        out_specs=tuple(pl.BlockSpec(memory_space=pltpu.MemorySpace.VMEM) for _ in out_shapes),
    )(*inputs)

    rx = recon[0].reshape(N_PED, S, T_PRED)
    ry = recon[1].reshape(N_PED, S, T_PRED)
    recon_traj = jnp.transpose(jnp.stack([rx, ry], axis=-1), (1, 0, 2, 3))  # (S, N, T_PRED, 2)

    return {
        "recon_traj": recon_traj,
        "loss_eigentraj": losses[0, 0],
        "loss_euclidean_ade": losses[0, 1],
        "loss_euclidean_fde": losses[0, 2],
    }


if __name__ == "__main__":
    key = jax.random.PRNGKey(0)
    k1, k2, k3 = jax.random.split(key, 3)

    # Synthetic trajectories: random walks; every other pedestrian is near-static
    # so both the moving (m) and static (s) Singular spaces are exercised.
    base = 5.0 * jax.random.normal(k1, (N_PED, 1, DIM), jnp.float32)
    steps = 0.5 * jax.random.normal(k2, (N_PED, T_OBS + T_PRED, DIM), jnp.float32)
    speed = jnp.where(jnp.arange(N_PED) % 2 == 0, 1.0, 0.02)[:, None, None]
    traj = base + jnp.cumsum(steps * speed, axis=1)
    obs_traj = traj[:, :T_OBS]                              # (N, T_OBS, 2)
    pred_traj = traj[:, T_OBS:]                             # (N, T_PRED, 2)
    adaptive_anchor = 0.5 * jax.random.normal(k3, (N_PED, K, S), jnp.float32)

    params = make_params()
    fwd = jax.jit(singular_trajectory_forward)
    out = fwd(obs_traj, adaptive_anchor, pred_traj, params)
    out = jax.block_until_ready(out)

    assert out["recon_traj"].shape == (S, N_PED, T_PRED, DIM)
    assert out["recon_traj"].dtype == jnp.float32
    assert all(jnp.isfinite(out[k]) for k in
               ("loss_eigentraj", "loss_euclidean_ade", "loss_euclidean_fde"))
    print("KERNEL_OK")
</pallas_src>

<mosaic_0001>
module attributes {stable_mosaic.version = 11 : i64} {
  func.func @singular_trajectory_kernel(%arg0: memref<2x16x8xf32, #tpu.memory_space<vmem>>, %arg1: memref<2x16x96xf32, #tpu.memory_space<vmem>>, %arg2: memref<16x48xf32, #tpu.memory_space<vmem>>, %arg3: memref<40x24xf32, #tpu.memory_space<vmem>>, %arg4: memref<4x48x96xf32, #tpu.memory_space<vmem>>, %arg5: memref<9x32xf32, #tpu.memory_space<vmem>>, %arg6: memref<33x48xf32, #tpu.memory_space<vmem>>, %arg7: memref<6x48xf32, #tpu.memory_space<vmem>>, %arg8: memref<48x8xf32, #tpu.memory_space<vmem>>, %arg9: memref<96x16xf32, #tpu.memory_space<vmem>>, %arg10: memref<2x16x96xf32, #tpu.memory_space<vmem>>, %arg11: memref<1x3xf32, #tpu.memory_space<vmem>>) attributes {dimension_semantics = [], scalar_prefetch = 0 : i64, scratch_operands = 0 : i64, tpu.core_type = #tpu.core_type<tc>} {
    %c0 = arith.constant 0 : index
    %c0_0 = arith.constant 0 : index
    %c0_1 = arith.constant 0 : index
    %0 = vector.load %arg0[%c0, %c0_0, %c0_1] : memref<2x16x8xf32, #tpu.memory_space<vmem>>, vector<1x16x8xf32>
    %1 = vector.shape_cast %0 : vector<1x16x8xf32> to vector<16x8xf32>
    %c1 = arith.constant 1 : index
    %c0_2 = arith.constant 0 : index
    %c0_3 = arith.constant 0 : index
    %2 = vector.load %arg0[%c1, %c0_2, %c0_3] : memref<2x16x8xf32, #tpu.memory_space<vmem>>, vector<1x16x8xf32>
    %3 = vector.shape_cast %2 : vector<1x16x8xf32> to vector<16x8xf32>
    %c0_4 = arith.constant 0 : index
    %c0_5 = arith.constant 0 : index
    %c0_6 = arith.constant 0 : index
    %4 = vector.load %arg1[%c0_4, %c0_5, %c0_6] : memref<2x16x96xf32, #tpu.memory_space<vmem>>, vector<1x16x96xf32>
    %5 = vector.shape_cast %4 : vector<1x16x96xf32> to vector<16x96xf32>
    %c1_7 = arith.constant 1 : index
    %c0_8 = arith.constant 0 : index
    %c0_9 = arith.constant 0 : index
    %6 = vector.load %arg1[%c1_7, %c0_8, %c0_9] : memref<2x16x96xf32, #tpu.memory_space<vmem>>, vector<1x16x96xf32>
    %7 = vector.shape_cast %6 : vector<1x16x96xf32> to vector<16x96xf32>
    %8 = vector.extract_strided_slice %5 {offsets = [0, 0], sizes = [16, 12], strides = [1, 1]} : vector<16x96xf32> to vector<16x12xf32>
    %9 = vector.extract_strided_slice %7 {offsets = [0, 0], sizes = [16, 12], strides = [1, 1]} : vector<16x96xf32> to vector<16x12xf32>
    %10 = vector.extract_strided_slice %1 {offsets = [0, 7], sizes = [16, 1], strides = [1, 1]} : vector<16x8xf32> to vector<16x1xf32>
    %11 = vector.extract_strided_slice %1 {offsets = [0, 5], sizes = [16, 1], strides = [1, 1]} : vector<16x8xf32> to vector<16x1xf32>
    %12 = arith.subf %10, %11 : vector<16x1xf32>
    %13 = vector.extract_strided_slice %3 {offsets = [0, 7], sizes = [16, 1], strides = [1, 1]} : vector<16x8xf32> to vector<16x1xf32>
    %14 = vector.extract_strided_slice %3 {offsets = [0, 5], sizes = [16, 1], strides = [1, 1]} : vector<16x8xf32> to vector<16x1xf32>
    %15 = arith.subf %13, %14 : vector<16x1xf32>
    %16 = arith.mulf %12, %12 : vector<16x1xf32>
    %17 = arith.mulf %15, %15 : vector<16x1xf32>
    %18 = arith.addf %16, %17 : vector<16x1xf32>
    %cst = arith.constant 3.600000e-01 : f32
    %19 = vector.broadcast %cst : f32 to vector<16x1xf32>
    %20 = arith.cmpf ogt, %18, %19 : vector<16x1xf32>
    %cst_10 = arith.constant 9.99999996E-13 : f32
    %21 = vector.broadcast %cst_10 : f32 to vector<16x1xf32>
    %22 = arith.maximumf %18, %21 : vector<16x1xf32>
    %23 = math.rsqrt %22 : vector<16x1xf32>
    %cst_11 = arith.constant 9.99999996E-13 : f32
    %24 = vector.broadcast %cst_11 : f32 to vector<16x1xf32>
    %25 = arith.cmpf olt, %18, %24 : vector<16x1xf32>
    %26 = arith.mulf %12, %23 : vector<16x1xf32>
    %cst_12 = arith.constant 1.000000e+00 : f32
    %27 = vector.broadcast %cst_12 : f32 to vector<16x1xf32>
    %28 = arith.select %25, %27, %26 : vector<16x1xi1>, vector<16x1xf32>
    %29 = arith.mulf %15, %23 : vector<16x1xf32>
    %cst_13 = arith.constant 0.000000e+00 : f32
    %30 = vector.broadcast %cst_13 : f32 to vector<16x1xf32>
    %31 = arith.select %25, %30, %29 : vector<16x1xi1>, vector<16x1xf32>
    %cst_14 = arith.constant 2.000000e+00 : f32
    %32 = vector.broadcast %cst_14 : f32 to vector<16x1xf32>
    %33 = arith.mulf %32, %23 : vector<16x1xf32>
    %cst_15 = arith.constant 5.000000e-01 : f32
    %34 = vector.broadcast %cst_15 : f32 to vector<16x1xf32>
    %35 = arith.mulf %34, %18 : vector<16x1xf32>
    %36 = arith.mulf %35, %23 : vector<16x1xf32>
    %37 = vector.extract_strided_slice %1 {offsets = [0, 7], sizes = [16, 1], strides = [1, 1]} : vector<16x8xf32> to vector<16x1xf32>
    %38 = vector.extract_strided_slice %3 {offsets = [0, 7], sizes = [16, 1], strides = [1, 1]} : vector<16x8xf32> to vector<16x1xf32>
    %39 = vector.broadcast %37 : vector<16x1xf32> to vector<16x8xf32>
    %40 = arith.subf %1, %39 : vector<16x8xf32>
    %41 = vector.broadcast %38 : vector<16x1xf32> to vector<16x8xf32>
    %42 = arith.subf %3, %41 : vector<16x8xf32>
    %43 = vector.broadcast %28 : vector<16x1xf32> to vector<16x8xf32>
    %44 = arith.mulf %40, %43 : vector<16x8xf32>
    %45 = vector.broadcast %31 : vector<16x1xf32> to vector<16x8xf32>
    %46 = arith.mulf %42, %45 : vector<16x8xf32>
    %47 = arith.addf %44, %46 : vector<16x8xf32>
    %cst_16 = arith.constant 0.000000e+00 : f32
    %48 = vector.broadcast %cst_16 : f32 to vector<16x8xf32>
    %49 = arith.subf %48, %40 : vector<16x8xf32>
    %50 = vector.broadcast %31 : vector<16x1xf32> to vector<16x8xf32>
    %51 = arith.mulf %49, %50 : vector<16x8xf32>
    %52 = vector.broadcast %28 : vector<16x1xf32> to vector<16x8xf32>
    %53 = arith.mulf %42, %52 : vector<16x8xf32>
    %54 = arith.addf %51, %53 : vector<16x8xf32>
    %55 = vector.broadcast %37 : vector<16x1xf32> to vector<16x12xf32>
    %56 = arith.subf %8, %55 : vector<16x12xf32>
    %57 = vector.broadcast %38 : vector<16x1xf32> to vector<16x12xf32>
    %58 = arith.subf %9, %57 : vector<16x12xf32>
    %59 = vector.broadcast %28 : vector<16x1xf32> to vector<16x12xf32>
    %60 = arith.mulf %56, %59 : vector<16x12xf32>
    %61 = vector.broadcast %31 : vector<16x1xf32> to vector<16x12xf32>
    %62 = arith.mulf %58, %61 : vector<16x12xf32>
    %63 = arith.addf %60, %62 : vector<16x12xf32>
    %cst_17 = arith.constant 0.000000e+00 : f32
    %64 = vector.broadcast %cst_17 : f32 to vector<16x12xf32>
    %65 = arith.subf %64, %56 : vector<16x12xf32>
    %66 = vector.broadcast %31 : vector<16x1xf32> to vector<16x12xf32>
    %67 = arith.mulf %65, %66 : vector<16x12xf32>
    %68 = vector.broadcast %28 : vector<16x1xf32> to vector<16x12xf32>
    %69 = arith.mulf %58, %68 : vector<16x12xf32>
    %70 = arith.addf %67, %69 : vector<16x12xf32>
    %71 = tpu.concatenate %47, %54, %63, %70 in 1 : vector<16x8xf32>, vector<16x8xf32>, vector<16x12xf32>, vector<16x12xf32> -> vector<16x40xf32>
    %c0_18 = arith.constant 0 : index
    %c0_19 = arith.constant 0 : index
    %72 = vector.load %arg3[%c0_18, %c0_19] : memref<40x24xf32, #tpu.memory_space<vmem>>, vector<40x24xf32>
    %cst_20 = arith.constant dense<0.000000e+00> : vector<16x24xf32>
    %73 = tpu.matmul %71, %72, %cst_20 {dimension_numbers = #tpu.dot_dimension_numbers<[1], [0], [0], [1], [0, 0, 1, 1], [], []>} : vector<16x40xf32>, vector<40x24xf32>, vector<16x24xf32> -> vector<16x24xf32>
    %74 = vector.extract_strided_slice %73 {offsets = [0, 0], sizes = [16, 6], strides = [1, 1]} : vector<16x24xf32> to vector<16x6xf32>
    %75 = vector.broadcast %33 : vector<16x1xf32> to vector<16x6xf32>
    %76 = arith.mulf %75, %74 : vector<16x6xf32>
    %77 = vector.extract_strided_slice %73 {offsets = [0, 6], sizes = [16, 6], strides = [1, 1]} : vector<16x24xf32> to vector<16x6xf32>
    %78 = vector.shape_cast %20 : vector<16x1xi1> to vector<16x1xi1>
    %79 = vector.broadcast %78 : vector<16x1xi1> to vector<16x6xi1>
    %80 = arith.select %79, %76, %77 : vector<16x6xi1>, vector<16x6xf32>
    %81 = vector.extract_strided_slice %73 {offsets = [0, 12], sizes = [16, 6], strides = [1, 1]} : vector<16x24xf32> to vector<16x6xf32>
    %82 = vector.broadcast %33 : vector<16x1xf32> to vector<16x6xf32>
    %83 = arith.mulf %82, %81 : vector<16x6xf32>
    %84 = vector.extract_strided_slice %73 {offsets = [0, 18], sizes = [16, 6], strides = [1, 1]} : vector<16x24xf32> to vector<16x6xf32>
    %85 = vector.shape_cast %20 : vector<16x1xi1> to vector<16x1xi1>
    %86 = vector.broadcast %85 : vector<16x1xi1> to vector<16x6xi1>
    %87 = arith.select %86, %83, %84 : vector<16x6xi1>, vector<16x6xf32>
    %88 = vector.shape_cast %37 : vector<16x1xf32> to vector<1x16x1xf32>
    %cst_21 = arith.constant dense<0.000000e+00> : vector<1xf32>
    %89 = vector.multi_reduction <add>, %88, %cst_21 [1, 2] : vector<1x16x1xf32> to vector<1xf32>
    %90 = vector.shape_cast %89 : vector<1xf32> to vector<1x1x1xf32>
    %91 = vector.extract %90[0, 0, 0] : f32 from vector<1x1x1xf32>
    %cst_22 = arith.constant 1.600000e+01 : f32
    %92 = arith.divf %91, %cst_22 : f32
    %93 = vector.broadcast %92 : f32 to vector<16x1xf32>
    %94 = arith.subf %37, %93 : vector<16x1xf32>
    %95 = vector.shape_cast %38 : vector<16x1xf32> to vector<1x16x1xf32>
    %cst_23 = arith.constant dense<0.000000e+00> : vector<1xf32>
    %96 = vector.multi_reduction <add>, %95, %cst_23 [1, 2] : vector<1x16x1xf32> to vector<1xf32>
    %97 = vector.shape_cast %96 : vector<1xf32> to vector<1x1x1xf32>
    %98 = vector.extract %97[0, 0, 0] : f32 from vector<1x1x1xf32>
    %cst_24 = arith.constant 1.600000e+01 : f32
    %99 = arith.divf %98, %cst_24 : f32
    %100 = vector.broadcast %99 : f32 to vector<16x1xf32>
    %101 = arith.subf %38, %100 : vector<16x1xf32>
    %cst_25 = arith.constant 1.000000e+00 : f32
    %102 = vector.broadcast %cst_25 : f32 to vector<16x1xf32>
    %103 = tpu.concatenate %80, %94, %101, %102 in 1 : vector<16x6xf32>, vector<16x1xf32>, vector<16x1xf32>, vector<16x1xf32> -> vector<16x9xf32>
    %c0_26 = arith.constant 0 : index
    %c0_27 = arith.constant 0 : index
    %104 = vector.load %arg5[%c0_26, %c0_27] : memref<9x32xf32, #tpu.memory_space<vmem>>, vector<9x32xf32>
    %cst_28 = arith.constant dense<0.000000e+00> : vector<16x32xf32>
    %105 = tpu.matmul %103, %104, %cst_28 {dimension_numbers = #tpu.dot_dimension_numbers<[1], [0], [0], [1], [0, 0, 1, 1], [], []>} : vector<16x9xf32>, vector<9x32xf32>, vector<16x32xf32> -> vector<16x32xf32>
    %cst_29 = arith.constant 0.000000e+00 : f32
    %106 = vector.broadcast %cst_29 : f32 to vector<16x32xf32>
    %107 = arith.maximumf %105, %106 : vector<16x32xf32>
    %108 = tpu.concatenate %107, %102 in 1 : vector<16x32xf32>, vector<16x1xf32> -> vector<16x33xf32>
    %c0_30 = arith.constant 0 : index
    %c0_31 = arith.constant 0 : index
    %109 = vector.load %arg6[%c0_30, %c0_31] : memref<33x48xf32, #tpu.memory_space<vmem>>, vector<33x48xf32>
    %cst_32 = arith.constant dense<0.000000e+00> : vector<16x48xf32>
    %110 = tpu.matmul %108, %109, %cst_32 {dimension_numbers = #tpu.dot_dimension_numbers<[1], [0], [0], [1], [0, 0, 1, 1], [], []>} : vector<16x33xf32>, vector<33x48xf32>, vector<16x48xf32> -> vector<16x48xf32>
    %c0_33 = arith.constant 0 : index
    %c0_34 = arith.constant 0 : index
    %111 = vector.load %arg2[%c0_33, %c0_34] : memref<16x48xf32, #tpu.memory_space<vmem>>, vector<16x48xf32>
    %112 = arith.addf %111, %110 : vector<16x48xf32>
    %c0_35 = arith.constant 0 : index
    %c0_36 = arith.constant 0 : index
    %c0_37 = arith.constant 0 : index
    %113 = vector.load %arg4[%c0_35, %c0_36, %c0_37] : memref<4x48x96xf32, #tpu.memory_space<vmem>>, vector<1x48x96xf32>
    %114 = vector.shape_cast %113 : vector<1x48x96xf32> to vector<48x96xf32>
    %cst_38 = arith.constant dense<0.000000e+00> : vector<16x96xf32>
    %115 = tpu.matmul %112, %114, %cst_38 {dimension_numbers = #tpu.dot_dimension_numbers<[1], [0], [0], [1], [0, 0, 1, 1], [], []>} : vector<16x48xf32>, vector<48x96xf32>, vector<16x96xf32> -> vector<16x96xf32>
    %c1_39 = arith.constant 1 : index
    %c0_40 = arith.constant 0 : index
    %c0_41 = arith.constant 0 : index
    %116 = vector.load %arg4[%c1_39, %c0_40, %c0_41] : memref<4x48x96xf32, #tpu.memory_space<vmem>>, vector<1x48x96xf32>
    %117 = vector.shape_cast %116 : vector<1x48x96xf32> to vector<48x96xf32>
    %cst_42 = arith.constant dense<0.000000e+00> : vector<16x96xf32>
    %118 = tpu.matmul %112, %117, %cst_42 {dimension_numbers = #tpu.dot_dimension_numbers<[1], [0], [0], [1], [0, 0, 1, 1], [], []>} : vector<16x48xf32>, vector<48x96xf32>, vector<16x96xf32> -> vector<16x96xf32>
    %c2 = arith.constant 2 : index
    %c0_43 = arith.constant 0 : index
    %c0_44 = arith.constant 0 : index
    %119 = vector.load %arg4[%c2, %c0_43, %c0_44] : memref<4x48x96xf32, #tpu.memory_space<vmem>>, vector<1x48x96xf32>
    %120 = vector.shape_cast %119 : vector<1x48x96xf32> to vector<48x96xf32>
    %cst_45 = arith.constant dense<0.000000e+00> : vector<16x96xf32>
    %121 = tpu.matmul %112, %120, %cst_45 {dimension_numbers = #tpu.dot_dimension_numbers<[1], [0], [0], [1], [0, 0, 1, 1], [], []>} : vector<16x48xf32>, vector<48x96xf32>, vector<16x96xf32> -> vector<16x96xf32>
    %c3 = arith.constant 3 : index
    %c0_46 = arith.constant 0 : index
    %c0_47 = arith.constant 0 : index
    %122 = vector.load %arg4[%c3, %c0_46, %c0_47] : memref<4x48x96xf32, #tpu.memory_space<vmem>>, vector<1x48x96xf32>
    %123 = vector.shape_cast %122 : vector<1x48x96xf32> to vector<48x96xf32>
    %cst_48 = arith.constant dense<0.000000e+00> : vector<16x96xf32>
    %124 = tpu.matmul %112, %123, %cst_48 {dimension_numbers = #tpu.dot_dimension_numbers<[1], [0], [0], [1], [0, 0, 1, 1], [], []>} : vector<16x48xf32>, vector<48x96xf32>, vector<16x96xf32> -> vector<16x96xf32>
    %125 = arith.mulf %28, %36 : vector<16x1xf32>
    %126 = arith.mulf %31, %36 : vector<16x1xf32>
    %127 = vector.broadcast %125 : vector<16x1xf32> to vector<16x96xf32>
    %128 = arith.mulf %115, %127 : vector<16x96xf32>
    %129 = vector.broadcast %126 : vector<16x1xf32> to vector<16x96xf32>
    %130 = arith.mulf %118, %129 : vector<16x96xf32>
    %131 = arith.subf %128, %130 : vector<16x96xf32>
    %132 = vector.broadcast %37 : vector<16x1xf32> to vector<16x96xf32>
    %133 = arith.addf %131, %132 : vector<16x96xf32>
    %134 = vector.broadcast %126 : vector<16x1xf32> to vector<16x96xf32>
    %135 = arith.mulf %115, %134 : vector<16x96xf32>
    %136 = vector.broadcast %125 : vector<16x1xf32> to vector<16x96xf32>
    %137 = arith.mulf %118, %136 : vector<16x96xf32>
    %138 = arith.addf %135, %137 : vector<16x96xf32>
    %139 = vector.broadcast %38 : vector<16x1xf32> to vector<16x96xf32>
    %140 = arith.addf %138, %139 : vector<16x96xf32>
    %141 = vector.broadcast %28 : vector<16x1xf32> to vector<16x96xf32>
    %142 = arith.mulf %121, %141 : vector<16x96xf32>
    %143 = vector.broadcast %31 : vector<16x1xf32> to vector<16x96xf32>
    %144 = arith.mulf %124, %143 : vector<16x96xf32>
    %145 = arith.subf %142, %144 : vector<16x96xf32>
    %146 = vector.broadcast %37 : vector<16x1xf32> to vector<16x96xf32>
    %147 = arith.addf %145, %146 : vector<16x96xf32>
    %148 = vector.broadcast %31 : vector<16x1xf32> to vector<16x96xf32>
    %149 = arith.mulf %121, %148 : vector<16x96xf32>
    %150 = vector.broadcast %28 : vector<16x1xf32> to vector<16x96xf32>
    %151 = arith.mulf %124, %150 : vector<16x96xf32>
    %152 = arith.addf %149, %151 : vector<16x96xf32>
    %153 = vector.broadcast %38 : vector<16x1xf32> to vector<16x96xf32>
    %154 = arith.addf %152, %153 : vector<16x96xf32>
    %155 = vector.shape_cast %20 : vector<16x1xi1> to vector<16x1xi1>
    %156 = vector.broadcast %155 : vector<16x1xi1> to vector<16x96xi1>
    %157 = arith.select %156, %133, %147 : vector<16x96xi1>, vector<16x96xf32>
    %158 = vector.shape_cast %20 : vector<16x1xi1> to vector<16x1xi1>
    %159 = vector.broadcast %158 : vector<16x1xi1> to vector<16x96xi1>
    %160 = arith.select %159, %140, %154 : vector<16x96xi1>, vector<16x96xf32>
    %c0_49 = arith.constant 0 : index
    %c0_50 = arith.constant 0 : index
    %c0_51 = arith.constant 0 : index
    %161 = vector.load %arg10[%c0_49, %c0_50, %c0_51] : memref<2x16x96xf32, #tpu.memory_space<vmem>>, vector<1x16x96xf32>
    %162 = vector.shape_cast %161 : vector<1x16x96xf32> to vector<16x96xf32>
    %163 = vector.shape_cast %157 : vector<16x96xf32> to vector<1x16x96xf32>
    tpu.vector_store %arg10[%c0_49, %c0_50, %c0_51], %163 {strides = array<i32>} : memref<2x16x96xf32, #tpu.memory_space<vmem>>, vector<1x16x96xf32>,
    %c1_52 = arith.constant 1 : index
    %c0_53 = arith.constant 0 : index
    %c0_54 = arith.constant 0 : index
    %164 = vector.load %arg10[%c1_52, %c0_53, %c0_54] : memref<2x16x96xf32, #tpu.memory_space<vmem>>, vector<1x16x96xf32>
    %165 = vector.shape_cast %164 : vector<1x16x96xf32> to vector<16x96xf32>
    %166 = vector.shape_cast %160 : vector<16x96xf32> to vector<1x16x96xf32>
    tpu.vector_store %arg10[%c1_52, %c0_53, %c0_54], %166 {strides = array<i32>} : memref<2x16x96xf32, #tpu.memory_space<vmem>>, vector<1x16x96xf32>,
    %c0_55 = arith.constant 0 : index
    %c0_56 = arith.constant 0 : index
    %167 = vector.load %arg7[%c0_55, %c0_56] : memref<6x48xf32, #tpu.memory_space<vmem>>, vector<6x48xf32>
    %cst_57 = arith.constant dense<0.000000e+00> : vector<16x48xf32>
    %168 = tpu.matmul %87, %167, %cst_57 {dimension_numbers = #tpu.dot_dimension_numbers<[1], [0], [0], [1], [0, 0, 1, 1], [], []>} : vector<16x6xf32>, vector<6x48xf32>, vector<16x48xf32> -> vector<16x48xf32>
    %169 = arith.subf %112, %168 : vector<16x48xf32>
    %170 = arith.mulf %169, %169 : vector<16x48xf32>
    %c0_58 = arith.constant 0 : index
    %c0_59 = arith.constant 0 : index
    %171 = vector.load %arg8[%c0_58, %c0_59] : memref<48x8xf32, #tpu.memory_space<vmem>>, vector<48x8xf32>
    %cst_60 = arith.constant dense<0.000000e+00> : vector<16x8xf32>
    %172 = tpu.matmul %170, %171, %cst_60 {dimension_numbers = #tpu.dot_dimension_numbers<[1], [0], [0], [1], [0, 0, 1, 1], [], []>} : vector<16x48xf32>, vector<48x8xf32>, vector<16x8xf32> -> vector<16x8xf32>
    %cst_61 = arith.constant dense<0x7F800000> : vector<16xf32>
    %173 = vector.multi_reduction <minimumf>, %172, %cst_61 [1] : vector<16x8xf32> to vector<16xf32>
    %174 = vector.shape_cast %173 : vector<16xf32> to vector<16x1xf32>
    %175 = math.sqrt %174 : vector<16x1xf32>
    %176 = vector.shape_cast %175 : vector<16x1xf32> to vector<1x16x1xf32>
    %cst_62 = arith.constant dense<0.000000e+00> : vector<1xf32>
    %177 = vector.multi_reduction <add>, %176, %cst_62 [1, 2] : vector<1x16x1xf32> to vector<1xf32>
    %178 = vector.shape_cast %177 : vector<1xf32> to vector<1x1x1xf32>
    %179 = vector.extract %178[0, 0, 0] : f32 from vector<1x1x1xf32>
    %180 = vector.broadcast %179 : f32 to vector<1x1xf32>
    %cst_63 = arith.constant 1.600000e+01 : f32
    %181 = vector.broadcast %cst_63 : f32 to vector<1x1xf32>
    %182 = arith.divf %180, %181 : vector<1x1xf32>
    %183 = arith.subf %157, %5 : vector<16x96xf32>
    %184 = arith.subf %160, %7 : vector<16x96xf32>
    %185 = arith.mulf %183, %183 : vector<16x96xf32>
    %186 = arith.mulf %184, %184 : vector<16x96xf32>
    %187 = arith.addf %185, %186 : vector<16x96xf32>
    %188 = math.sqrt %187 : vector<16x96xf32>
    %c0_64 = arith.constant 0 : index
    %c0_65 = arith.constant 0 : index
    %189 = vector.load %arg9[%c0_64, %c0_65] : memref<96x16xf32, #tpu.memory_space<vmem>>, vector<96x16xf32>
    %cst_66 = arith.constant dense<0.000000e+00> : vector<16x16xf32>
    %190 = tpu.matmul %188, %189, %cst_66 {dimension_numbers = #tpu.dot_dimension_numbers<[1], [0], [0], [1], [0, 0, 1, 1], [], []>} : vector<16x96xf32>, vector<96x16xf32>, vector<16x16xf32> -> vector<16x16xf32>
    %191 = vector.extract_strided_slice %190 {offsets = [0, 0], sizes = [16, 8], strides = [1, 1]} : vector<16x16xf32> to vector<16x8xf32>
    %cst_67 = arith.constant dense<0x7F800000> : vector<16xf32>
    %192 = vector.multi_reduction <minimumf>, %191, %cst_67 [1] : vector<16x8xf32> to vector<16xf32>
    %193 = vector.shape_cast %192 : vector<16xf32> to vector<16x1xf32>
    %194 = vector.shape_cast %193 : vector<16x1xf32> to vector<1x16x1xf32>
    %cst_68 = arith.constant dense<0.000000e+00> : vector<1xf32>
    %195 = vector.multi_reduction <add>, %194, %cst_68 [1, 2] : vector<1x16x1xf32> to vector<1xf32>
    %196 = vector.shape_cast %195 : vector<1xf32> to vector<1x1x1xf32>
    %197 = vector.extract %196[0, 0, 0] : f32 from vector<1x1x1xf32>
    %198 = vector.broadcast %197 : f32 to vector<1x1xf32>
    %cst_69 = arith.constant 1.600000e+01 : f32
    %199 = vector.broadcast %cst_69 : f32 to vector<1x1xf32>
    %200 = arith.divf %198, %199 : vector<1x1xf32>
    %201 = vector.extract_strided_slice %190 {offsets = [0, 8], sizes = [16, 8], strides = [1, 1]} : vector<16x16xf32> to vector<16x8xf32>
    %cst_70 = arith.constant dense<0x7F800000> : vector<16xf32>
    %202 = vector.multi_reduction <minimumf>, %201, %cst_70 [1] : vector<16x8xf32> to vector<16xf32>
    %203 = vector.shape_cast %202 : vector<16xf32> to vector<16x1xf32>
    %204 = vector.shape_cast %203 : vector<16x1xf32> to vector<1x16x1xf32>
    %cst_71 = arith.constant dense<0.000000e+00> : vector<1xf32>
    %205 = vector.multi_reduction <add>, %204, %cst_71 [1, 2] : vector<1x16x1xf32> to vector<1xf32>
    %206 = vector.shape_cast %205 : vector<1xf32> to vector<1x1x1xf32>
    %207 = vector.extract %206[0, 0, 0] : f32 from vector<1x1x1xf32>
    %208 = vector.broadcast %207 : f32 to vector<1x1xf32>
    %cst_72 = arith.constant 1.600000e+01 : f32
    %209 = vector.broadcast %cst_72 : f32 to vector<1x1xf32>
    %210 = arith.divf %208, %209 : vector<1x1xf32>
    %211 = tpu.concatenate %182, %200, %210 in 1 : vector<1x1xf32>, vector<1x1xf32>, vector<1x1xf32> -> vector<1x3xf32>
    %c0_73 = arith.constant 0 : index
    %c0_74 = arith.constant 0 : index
    %212 = vector.load %arg11[%c0_73, %c0_74] : memref<1x3xf32, #tpu.memory_space<vmem>>, vector<1x3xf32>
    tpu.vector_store %arg11[%c0_73, %c0_74], %211 {strides = array<i32>} : memref<1x3xf32, #tpu.memory_space<vmem>>, vector<1x3xf32>,
    return
  }
}

</mosaic_0001>

<llo_original>
// kernel: tile.14
$region0: #{tile.14}
  %s0 = inlined_call_operand.vmem [shape: f32[2,16,8,12], index: 0, kind: input, shape index: {}]
  %s1 = inlined_call_operand.vmem [shape: f32[2,16,96], index: 1, kind: output, shape index: {}]
  %v2 = vld [vmem:[%s0] ss:$8 sm:$0xf]
  %v3 = vld [vmem:[%s0] ss:$8 sm:$0xf0]
  %vm4 = vcmask 1047556
  %v5 = vsel %vm4, %v3, %v2
  %vm6 = vcmask 97280
  %7 = vst.msk [vmem:[%s1] sm:$0xff] %vm6, %v5
  %s8 = scalar_lea.vmem %s0, 64
  %v9 = vld [vmem:[%s8] ss:$8 sm:$0xf]
  %s10 = scalar_lea.vmem %s0, 64
  %v11 = vld [vmem:[%s10] ss:$8 sm:$0xf0]
  %vm12 = vcmask 1047556
  %v13 = vsel %vm12, %v11, %v9
  %vm14 = vcmask 97280
  %s15 = scalar_lea.vmem %s1, 8
  %16 = vst.msk [vmem:[%s15] sm:$0xff] %vm14, %v13
  %s17 = scalar_lea.vmem %s0, 128
  %v18 = vld [vmem:[%s17] ss:$8 sm:$0xf]
  %s19 = scalar_lea.vmem %s0, 128
  %v20 = vld [vmem:[%s19] ss:$8 sm:$0xf0]
  %vm21 = vcmask 1047556
  %v22 = vsel %vm21, %v20, %v18
  %vm23 = vcmask 97280
  %s24 = scalar_lea.vmem %s1, 16
  %25 = vst.msk [vmem:[%s24] sm:$0xff] %vm23, %v22
  %s26 = scalar_lea.vmem %s0, 192
  %v27 = vld [vmem:[%s26] ss:$8 sm:$0xf]
  %s28 = scalar_lea.vmem %s0, 192
  %v29 = vld [vmem:[%s28] ss:$8 sm:$0xf0]
  %vm30 = vcmask 1047556
  %v31 = vsel %vm30, %v29, %v27
  %vm32 = vcmask 97280
  %s33 = scalar_lea.vmem %s1, 24
  %34 = vst.msk [vmem:[%s33] sm:$0xff] %vm32, %v31
  %s35 = scalar_lea.vmem %s0, 7
  %v36 = vld [vmem:[%s35] ss:$8 sm:$0xf]
  %s37 = scalar_lea.vmem %s0, 7
  %v38 = vld [vmem:[%s37] ss:$8 sm:$0xf0]
  %vm39 = vcmask 1047556
  %v40 = vsel %vm39, %v38, %v36
  %41 = vrot.lane.b32.xlu0 %v40, 84
  %v42 = vpop.permute.xlu0 %41
  %vm43 = vcmask 786080
  %44 = vst.msk [vmem:[%s1] sm:$0xff] %vm43, %v42
  %s45 = scalar_lea.vmem %s0, 71
  %v46 = vld [vmem:[%s45] ss:$8 sm:$0xf]
  %s47 = scalar_lea.vmem %s0, 71
  %v48 = vld [vmem:[%s47] ss:$8 sm:$0xf0]
  %vm49 = vcmask 1047556
  %v50 = vsel %vm49, %v48, %v46
  %51 = vrot.lane.b32.xlu0 %v50, 84
  %v52 = vpop.permute.xlu0 %51
  %vm53 = vcmask 786080
  %s54 = scalar_lea.vmem %s1, 8
  %55 = vst.msk [vmem:[%s54] sm:$0xff] %vm53, %v52
  %s56 = scalar_lea.vmem %s0, 135
  %v57 = vld [vmem:[%s56] ss:$8 sm:$0xf]
  %s58 = scalar_lea.vmem %s0, 135
  %v59 = vld [vmem:[%s58] ss:$8 sm:$0xf0]
  %vm60 = vcmask 1047556
  %v61 = vsel %vm60, %v59, %v57
  %62 = vrot.lane.b32.xlu0 %v61, 84
  %v63 = vpop.permute.xlu0 %62
  %vm64 = vcmask 786080
  %s65 = scalar_lea.vmem %s1, 16
  %66 = vst.msk [vmem:[%s65] sm:$0xff] %vm64, %v63
  %s67 = scalar_lea.vmem %s0, 199
  %v68 = vld [vmem:[%s67] ss:$8 sm:$0xf]
  %s69 = scalar_lea.vmem %s0, 199
  %v70 = vld [vmem:[%s69] ss:$8 sm:$0xf0]
  %vm71 = vcmask 1047556
  %v72 = vsel %vm71, %v70, %v68
  %73 = vrot.lane.b32.xlu0 %v72, 84
  %v74 = vpop.permute.xlu0 %73
  %vm75 = vcmask 786080
  %s76 = scalar_lea.vmem %s1, 24
  %77 = vst.msk [vmem:[%s76] sm:$0xff] %vm75, %v74
  %s78 = scalar_lea.vmem %s0, 6
  %v79 = vld [vmem:[%s78] ss:$8 sm:$0xf]
  %s80 = scalar_lea.vmem %s0, 6
  %v81 = vld [vmem:[%s80] ss:$8 sm:$0xf0]
  %vm82 = vcmask 1047556
  %v83 = vsel %vm82, %v81, %v79
  %84 = vrot.lane.b32.xlu0 %v83, 72
  %v85 = vpop.permute.xlu0 %84
  %vm86 = vcmask 687680
  %87 = vst.msk [vmem:[%s1] sm:$0xff] %vm86, %v85
  %s88 = scalar_lea.vmem %s0, 70
  %v89 = vld [vmem:[%s88] ss:$8 sm:$0xf]
  %s90 = scalar_lea.vmem %s0, 70
  %v91 = vld [vmem:[%s90] ss:$8 sm:$0xf0]
  %vm92 = vcmask 1047556
  %v93 = vsel %vm92, %v91, %v89
  %94 = vrot.lane.b32.xlu0 %v93, 72
  %v95 = vpop.permute.xlu0 %94
  %vm96 = vcmask 687680
  %s97 = scalar_lea.vmem %s1, 8
  %98 = vst.msk [vmem:[%s97] sm:$0xff] %vm96, %v95
  %s99 = scalar_lea.vmem %s0, 134
  %v100 = vld [vmem:[%s99] ss:$8 sm:$0xf]
  %s101 = scalar_lea.vmem %s0, 134
  %v102 = vld [vmem:[%s101] ss:$8 sm:$0xf0]
  %vm103 = vcmask 1047556
  %v104 = vsel %vm103, %v102, %v100
  %105 = vrot.lane.b32.xlu0 %v104, 72
  %v106 = vpop.permute.xlu0 %105
  %vm107 = vcmask 687680
  %s108 = scalar_lea.vmem %s1, 16
  %109 = vst.msk [vmem:[%s108] sm:$0xff] %vm107, %v106
  %s110 = scalar_lea.vmem %s0, 198
  %v111 = vld [vmem:[%s110] ss:$8 sm:$0xf]
  %s112 = scalar_lea.vmem %s0, 198
  %v113 = vld [vmem:[%s112] ss:$8 sm:$0xf0]
  %vm114 = vcmask 1047556
  %v115 = vsel %vm114, %v113, %v111
  %116 = vrot.lane.b32.xlu0 %v115, 72
  %v117 = vpop.permute.xlu0 %116
  %vm118 = vcmask 687680
  %s119 = scalar_lea.vmem %s1, 24
  %120 = vst.msk [vmem:[%s119] sm:$0xff] %vm118, %v117
  %s121 = scalar_lea.vmem %s0, 5
  %v122 = vld [vmem:[%s121] ss:$8 sm:$0xf]
  %s123 = scalar_lea.vmem %s0, 5
  %v124 = vld [vmem:[%s123] ss:$8 sm:$0xf0]
  %vm125 = vcmask 1047556
  %v126 = vsel %vm125, %v124, %v122
  %127 = vrot.lane.b32.xlu0 %v126, 60
  %v128 = vpop.permute.xlu0 %127
  %vm129 = vcmask 589280
  %130 = vst.msk [vmem:[%s1] sm:$0xff] %vm129, %v128
  %s131 = scalar_lea.vmem %s0, 69
  %v132 = vld [vmem:[%s131] ss:$8 sm:$0xf]
  %s133 = scalar_lea.vmem %s0, 69
  %v134 = vld [vmem:[%s133] ss:$8 sm:$0xf0]
  %vm135 = vcmask 1047556
  %v136 = vsel %vm135, %v134, %v132
  %137 = vrot.lane.b32.xlu0 %v136, 60
  %v138 = vpop.permute.xlu0 %137
  %vm139 = vcmask 589280
  %s140 = scalar_lea.vmem %s1, 8
  %141 = vst.msk [vmem:[%s140] sm:$0xff] %vm139, %v138
  %s142 = scalar_lea.vmem %s0, 133
  %v143 = vld [vmem:[%s142] ss:$8 sm:$0xf]
  %s144 = scalar_lea.vmem %s0, 133
  %v145 = vld [vmem:[%s144] ss:$8 sm:$0xf0]
  %vm146 = vcmask 1047556
  %v147 = vsel %vm146, %v145, %v143
  %148 = vrot.lane.b32.xlu0 %v147, 60
  %v149 = vpop.permute.xlu0 %148
  %vm150 = vcmask 589280
  %s151 = scalar_lea.vmem %s1, 16
  %152 = vst.msk [vmem:[%s151] sm:$0xff] %vm150, %v149
  %s153 = scalar_lea.vmem %s0, 197
  %v154 = vld [vmem:[%s153] ss:$8 sm:$0xf]
  %s155 = scalar_lea.vmem %s0, 197
  %v156 = vld [vmem:[%s155] ss:$8 sm:$0xf0]
  %vm157 = vcmask 1047556
  %v158 = vsel %vm157, %v156, %v154
  %159 = vrot.lane.b32.xlu0 %v158, 60
  %v160 = vpop.permute.xlu0 %159
  %vm161 = vcmask 589280
  %s162 = scalar_lea.vmem %s1, 24
  %163 = vst.msk [vmem:[%s162] sm:$0xff] %vm161, %v160
  %s164 = scalar_lea.vmem %s0, 4
  %v165 = vld [vmem:[%s164] ss:$8 sm:$0xf]
  %s166 = scalar_lea.vmem %s0, 4
  %v167 = vld [vmem:[%s166] ss:$8 sm:$0xf0]
  %vm168 = vcmask 1047556
  %v169 = vsel %vm168, %v167, %v165
  %170 = vrot.lane.b32.xlu0 %v169, 48
  %v171 = vpop.permute.xlu0 %170
  %vm172 = vcmask 490880
  %173 = vst.msk [vmem:[%s1] sm:$0xff] %vm172, %v171
  %s174 = scalar_lea.vmem %s0, 68
  %v175 = vld [vmem:[%s174] ss:$8 sm:$0xf]
  %s176 = scalar_lea.vmem %s0, 68
  %v177 = vld [vmem:[%s176] ss:$8 sm:$0xf0]
  %vm178 = vcmask 1047556
  %v179 = vsel %vm178, %v177, %v175
  %180 = vrot.lane.b32.xlu0 %v179, 48
  %v181 = vpop.permute.xlu0 %180
  %vm182 = vcmask 490880
  %s183 = scalar_lea.vmem %s1, 8
  %184 = vst.msk [vmem:[%s183] sm:$0xff] %vm182, %v181
  %s185 = scalar_lea.vmem %s0, 132
  %v186 = vld [vmem:[%s185] ss:$8 sm:$0xf]
  %s187 = scalar_lea.vmem %s0, 132
  %v188 = vld [vmem:[%s187] ss:$8 sm:$0xf0]
  %vm189 = vcmask 1047556
  %v190 = vsel %vm189, %v188, %v186
  %191 = vrot.lane.b32.xlu0 %v190, 48
  %v192 = vpop.permute.xlu0 %191
  %vm193 = vcmask 490880
  %s194 = scalar_lea.vmem %s1, 16
  %195 = vst.msk [vmem:[%s194] sm:$0xff] %vm193, %v192
  %s196 = scalar_lea.vmem %s0, 196
  %v197 = vld [vmem:[%s196] ss:$8 sm:$0xf]
  %s198 = scalar_lea.vmem %s0, 196
  %v199 = vld [vmem:[%s198] ss:$8 sm:$0xf0]
  %vm200 = vcmask 1047556
  %v201 = vsel %vm200, %v199, %v197
  %202 = vrot.lane.b32.xlu0 %v201, 48
  %v203 = vpop.permute.xlu0 %202
  %vm204 = vcmask 490880
  %s205 = scalar_lea.vmem %s1, 24
  %206 = vst.msk [vmem:[%s205] sm:$0xff] %vm204, %v203
  %s207 = scalar_lea.vmem %s0, 3
  %v208 = vld [vmem:[%s207] ss:$8 sm:$0xf]
  %s209 = scalar_lea.vmem %s0, 3
  %v210 = vld [vmem:[%s209] ss:$8 sm:$0xf0]
  %vm211 = vcmask 1047556
  %v212 = vsel %vm211, %v210, %v208
  %213 = vrot.lane.b32.xlu0 %v212, 36
  %v214 = vpop.permute.xlu0 %213
  %vm215 = vcmask 392480
  %216 = vst.msk [vmem:[%s1] sm:$0xff] %vm215, %v214
  %s217 = scalar_lea.vmem %s0, 67
  %v218 = vld [vmem:[%s217] ss:$8 sm:$0xf]
  %s219 = scalar_lea.vmem %s0, 67
  %v220 = vld [vmem:[%s219] ss:$8 sm:$0xf0]
  %vm221 = vcmask 1047556
  %v222 = vsel %vm221, %v220, %v218
  %223 = vrot.lane.b32.xlu0 %v222, 36
  %v224 = vpop.permute.xlu0 %223
  %vm225 = vcmask 392480
  %s226 = scalar_lea.vmem %s1, 8
  %227 = vst.msk [vmem:[%s226] sm:$0xff] %vm225, %v224
  %s228 = scalar_lea.vmem %s0, 131
  %v229 = vld [vmem:[%s228] ss:$8 sm:$0xf]
  %s230 = scalar_lea.vmem %s0, 131
  %v231 = vld [vmem:[%s230] ss:$8 sm:$0xf0]
  %vm232 = vcmask 1047556
  %v233 = vsel %vm232, %v231, %v229
  %234 = vrot.lane.b32.xlu0 %v233, 36
  %v235 = vpop.permute.xlu0 %234
  %vm236 = vcmask 392480
  %s237 = scalar_lea.vmem %s1, 16
  %238 = vst.msk [vmem:[%s237] sm:$0xff] %vm236, %v235
  %s239 = scalar_lea.vmem %s0, 195
  %v240 = vld [vmem:[%s239] ss:$8 sm:$0xf]
  %s241 = scalar_lea.vmem %s0, 195
  %v242 = vld [vmem:[%s241] ss:$8 sm:$0xf0]
  %vm243 = vcmask 1047556
  %v244 = vsel %vm243, %v242, %v240
  %245 = vrot.lane.b32.xlu0 %v244, 36
  %v246 = vpop.permute.xlu0 %245
  %vm247 = vcmask 392480
  %s248 = scalar_lea.vmem %s1, 24
  %249 = vst.msk [vmem:[%s248] sm:$0xff] %vm247, %v246
  %s250 = scalar_lea.vmem %s0, 2
  %v251 = vld [vmem:[%s250] ss:$8 sm:$0xf]
  %s252 = scalar_lea.vmem %s0, 2
  %v253 = vld [vmem:[%s252] ss:$8 sm:$0xf0]
  %vm254 = vcmask 1047556
  %v255 = vsel %vm254, %v253, %v251
  %256 = vrot.lane.b32.xlu0 %v255, 24
  %v257 = vpop.permute.xlu0 %256
  %vm258 = vcmask 294080
  %259 = vst.msk [vmem:[%s1] sm:$0xff] %vm258, %v257
  %s260 = scalar_lea.vmem %s0, 66
  %v261 = vld [vmem:[%s260] ss:$8 sm:$0xf]
  %s262 = scalar_lea.vmem %s0, 66
  %v263 = vld [vmem:[%s262] ss:$8 sm:$0xf0]
  %vm264 = vcmask 1047556
  %v265 = vsel %vm264, %v263, %v261
  %266 = vrot.lane.b32.xlu0 %v265, 24
  %v267 = vpop.permute.xlu0 %266
  %vm268 = vcmask 294080
  %s269 = scalar_lea.vmem %s1, 8
  %270 = vst.msk [vmem:[%s269] sm:$0xff] %vm268, %v267
  %s271 = scalar_lea.vmem %s0, 130
  %v272 = vld [vmem:[%s271] ss:$8 sm:$0xf]
  %s273 = scalar_lea.vmem %s0, 130
  %v274 = vld [vmem:[%s273] ss:$8 sm:$0xf0]
  %vm275 = vcmask 1047556
  %v276 = vsel %vm275, %v274, %v272
  %277 = vrot.lane.b32.xlu0 %v276, 24
  %v278 = vpop.permute.xlu0 %277
  %vm279 = vcmask 294080
  %s280 = scalar_lea.vmem %s1, 16
  %281 = vst.msk [vmem:[%s280] sm:$0xff] %vm279, %v278
  %s282 = scalar_lea.vmem %s0, 194
  %v283 = vld [vmem:[%s282] ss:$8 sm:$0xf]
  %s284 = scalar_lea.vmem %s0, 194
  %v285 = vld [vmem:[%s284] ss:$8 sm:$0xf0]
  %vm286 = vcmask 1047556
  %v287 = vsel %vm286, %v285, %v283
  %288 = vrot.lane.b32.xlu0 %v287, 24
  %v289 = vpop.permute.xlu0 %288
  %vm290 = vcmask 294080
  %s291 = scalar_lea.vmem %s1, 24
  %292 = vst.msk [vmem:[%s291] sm:$0xff] %vm290, %v289
  %s293 = scalar_lea.vmem %s0, 1
  %v294 = vld [vmem:[%s293] ss:$8 sm:$0xf]
  %s295 = scalar_lea.vmem %s0, 1
  %v296 = vld [vmem:[%s295] ss:$8 sm:$0xf0]
  %vm297 = vcmask 1047556
  %v298 = vsel %vm297, %v296, %v294
  %299 = vrot.lane.b32.xlu0 %v298, 12
  %v300 = vpop.permute.xlu0 %299
  %vm301 = vcmask 195680
  %302 = vst.msk [vmem:[%s1] sm:$0xff] %vm301, %v300
  %s303 = scalar_lea.vmem %s0, 65
  %v304 = vld [vmem:[%s303] ss:$8 sm:$0xf]
  %s305 = scalar_lea.vmem %s0, 65
  %v306 = vld [vmem:[%s305] ss:$8 sm:$0xf0]
  %vm307 = vcmask 1047556
  %v308 = vsel %vm307, %v306, %v304
  %309 = vrot.lane.b32.xlu0 %v308, 12
  %v310 = vpop.permute.xlu0 %309
  %vm311 = vcmask 195680
  %s312 = scalar_lea.vmem %s1, 8
  %313 = vst.msk [vmem:[%s312] sm:$0xff] %vm311, %v310
  %s314 = scalar_lea.vmem %s0, 129
  %v315 = vld [vmem:[%s314] ss:$8 sm:$0xf]
  %s316 = scalar_lea.vmem %s0, 129
  %v317 = vld [vmem:[%s316] ss:$8 sm:$0xf0]
  %vm318 = vcmask 1047556
  %v319 = vsel %vm318, %v317, %v315
  %320 = vrot.lane.b32.xlu0 %v319, 12
  %v321 = vpop.permute.xlu0 %320
  %vm322 = vcmask 195680
  %s323 = scalar_lea.vmem %s1, 16
  %324 = vst.msk [vmem:[%s323] sm:$0xff] %vm322, %v321
  %s325 = scalar_lea.vmem %s0, 193
  %v326 = vld [vmem:[%s325] ss:$8 sm:$0xf]
  %s327 = scalar_lea.vmem %s0, 193
  %v328 = vld [vmem:[%s327] ss:$8 sm:$0xf0]
  %vm329 = vcmask 1047556
  %v330 = vsel %vm329, %v328, %v326
  %331 = vrot.lane.b32.xlu0 %v330, 12
  %v332 = vpop.permute.xlu0 %331
  %vm333 = vcmask 195680
  %s334 = scalar_lea.vmem %s1, 24
  %335 = vst.msk [vmem:[%s334] sm:$0xff] %vm333, %v332

// kernel: tile.19
$region0: #{tile.19}
  %s0 = inlined_call_operand.vmem [shape: f32[6,8,6], index: 0, kind: input, shape index: {}]
  %s1 = inlined_call_operand.vmem [shape: f32[6,48], index: 1, kind: output, shape index: {}]
  %v2 = vld [vmem:[%s0] ss:$8 sm:$0xf]
  %s3 = smov 48
  %v4 = vld [vmem:[%s0] ss:$8 sm:%s3]
  %vm5 = vcmask 1045508
  %v6 = vsel %vm5, %v4, %v2
  %vm7 = vcmask 48128
  %8 = vst.msk [vmem:[%s1] sm:$0x3f] %vm7, %v6
  %s9 = scalar_lea.vmem %s0, 7
  %v10 = vld [vmem:[%s9] ss:$8 sm:$0xf]
  %s11 = scalar_lea.vmem %s0, 7
  %s12 = smov 48
  %v13 = vld [vmem:[%s11] ss:$8 sm:%s12]
  %vm14 = vcmask 1045508
  %v15 = vsel %vm14, %v13, %v10
  %16 = vrot.lane.b32.xlu0 %v15, 42
  %v17 = vpop.permute.xlu0 %16
  %vm18 = vcmask 392528
  %19 = vst.msk [vmem:[%s1] sm:$0x3f] %vm18, %v17
  %s20 = scalar_lea.vmem %s0, 6
  %v21 = vld [vmem:[%s20] ss:$8 sm:$0xf]
  %s22 = scalar_lea.vmem %s0, 6
  %s23 = smov 48
  %v24 = vld [vmem:[%s22] ss:$8 sm:%s23]
  %vm25 = vcmask 1045508
  %v26 = vsel %vm25, %v24, %v21
  %27 = vrot.lane.b32.xlu0 %v26, 36
  %v28 = vpop.permute.xlu0 %27
  %vm29 = vcmask 343328
  %30 = vst.msk [vmem:[%s1] sm:$0x3f] %vm29, %v28
  %s31 = scalar_lea.vmem %s0, 5
  %v32 = vld [vmem:[%s31] ss:$8 sm:$0xf]
  %s33 = scalar_lea.vmem %s0, 5
  %s34 = smov 48
  %v35 = vld [vmem:[%s33] ss:$8 sm:%s34]
  %vm36 = vcmask 1045508
  %v37 = vsel %vm36, %v35, %v32
  %38 = vrot.lane.b32.xlu0 %v37, 30
  %v39 = vpop.permute.xlu0 %38
  %vm40 = vcmask 294128
  %41 = vst.msk [vmem:[%s1] sm:$0x3f] %vm40, %v39
  %s42 = scalar_lea.vmem %s0, 4
  %v43 = vld [vmem:[%s42] ss:$8 sm:$0xf]
  %s44 = scalar_lea.vmem %s0, 4
  %s45 = smov 48
  %v46 = vld [vmem:[%s44] ss:$8 sm:%s45]
  %vm47 = vcmask 1045508
  %v48 = vsel %vm47, %v46, %v43
  %49 = vrot.lane.b32.xlu0 %v48, 24
  %v50 = vpop.permute.xlu0 %49
  %vm51 = vcmask 244928
  %52 = vst.msk [vmem:[%s1] sm:$0x3f] %vm51, %v50
  %s53 = scalar_lea.vmem %s0, 3
  %v54 = vld [vmem:[%s53] ss:$8 sm:$0xf]
  %s55 = scalar_lea.vmem %s0, 3
  %s56 = smov 48
  %v57 = vld [vmem:[%s55] ss:$8 sm:%s56]
  %vm58 = vcmask 1045508
  %v59 = vsel %vm58, %v57, %v54
  %60 = vrot.lane.b32.xlu0 %v59, 18
  %v61 = vpop.permute.xlu0 %60
  %vm62 = vcmask 195728
  %63 = vst.msk [vmem:[%s1] sm:$0x3f] %vm62, %v61
  %s64 = scalar_lea.vmem %s0, 2
  %v65 = vld [vmem:[%s64] ss:$8 sm:$0xf]
  %s66 = scalar_lea.vmem %s0, 2
  %s67 = smov 48
  %v68 = vld [vmem:[%s66] ss:$8 sm:%s67]
  %vm69 = vcmask 1045508
  %v70 = vsel %vm69, %v68, %v65
  %71 = vrot.lane.b32.xlu0 %v70, 12
  %v72 = vpop.permute.xlu0 %71
  %vm73 = vcmask 146528
  %74 = vst.msk [vmem:[%s1] sm:$0x3f] %vm73, %v72
  %s75 = scalar_lea.vmem %s0, 1
  %v76 = vld [vmem:[%s75] ss:$8 sm:$0xf]
  %s77 = scalar_lea.vmem %s0, 1
  %s78 = smov 48
  %v79 = vld [vmem:[%s77] ss:$8 sm:%s78]
  %vm80 = vcmask 1045508
  %v81 = vsel %vm80, %v79, %v76
  %82 = vrot.lane.b32.xlu0 %v81, 6
  %v83 = vpop.permute.xlu0 %82
  %vm84 = vcmask 97328
  %85 = vst.msk [vmem:[%s1] sm:$0x3f] %vm84, %v83

// kernel: squeeze.5
$region0: #{squeeze.5}
  %s0 = inlined_call_operand.vmem [shape: f32[1,16,96], index: 0, kind: input, shape index: {}]
  %s1 = inlined_call_operand.vmem [shape: f32[16,8,12,1], index: 1, kind: output, shape index: {}]
  %v2 = vld [vmem:[%s0] sm:$0xff]
  %vm3 = vcmask 97280
  %4 = vst.msk [vmem:[%s1] ss:$8 sm:$0xf] %vm3, %v2
  %5 = vst.msk [vmem:[%s1] ss:$8 sm:$0xf0] %vm3, %v2
  %s6 = scalar_lea.vmem %s0, 8
  %v7 = vld [vmem:[%s6] sm:$0xff]
  %vm8 = vcmask 97280
  %s9 = scalar_lea.vmem %s1, 64
  %10 = vst.msk [vmem:[%s9] ss:$8 sm:$0xf] %vm8, %v7
  %s11 = scalar_lea.vmem %s1, 64
  %12 = vst.msk [vmem:[%s11] ss:$8 sm:$0xf0] %vm8, %v7
  %v13 = vld [vmem:[%s0] sm:$0xff]
  %14 = vrot.lane.b32.xlu0 %v13, 116
  %v15 = vpop.permute.xlu0 %14
  %vm16 = vcmask 97280
  %s17 = scalar_lea.vmem %s1, 1
  %18 = vst.msk [vmem:[%s17] ss:$8 sm:$0xf] %vm16, %v15
  %s19 = scalar_lea.vmem %s1, 1
  %20 = vst.msk [vmem:[%s19] ss:$8 sm:$0xf0] %vm16, %v15
  %s21 = scalar_lea.vmem %s0, 8
  %v22 = vld [vmem:[%s21] sm:$0xff]
  %23 = vrot.lane.b32.xlu0 %v22, 116
  %v24 = vpop.permute.xlu0 %23
  %vm25 = vcmask 97280
  %s26 = scalar_lea.vmem %s1, 65
  %27 = vst.msk [vmem:[%s26] ss:$8 sm:$0xf] %vm25, %v24
  %s28 = scalar_lea.vmem %s1, 65
  %29 = vst.msk [vmem:[%s28] ss:$8 sm:$0xf0] %vm25, %v24
  %v30 = vld [vmem:[%s0] sm:$0xff]
  %31 = vrot.lane.b32.xlu0 %v30, 104
  %v32 = vpop.permute.xlu0 %31
  %vm33 = vcmask 97280
  %s34 = scalar_lea.vmem %s1, 2
  %35 = vst.msk [vmem:[%s34] ss:$8 sm:$0xf] %vm33, %v32
  %s36 = scalar_lea.vmem %s1, 2
  %37 = vst.msk [vmem:[%s36] ss:$8 sm:$0xf0] %vm33, %v32
  %s38 = scalar_lea.vmem %s0, 8
  %v39 = vld [vmem:[%s38] sm:$0xff]
  %40 = vrot.lane.b32.xlu0 %v39, 104
  %v41 = vpop.permute.xlu0 %40
  %vm42 = vcmask 97280
  %s43 = scalar_lea.vmem %s1, 66
  %44 = vst.msk [vmem:[%s43] ss:$8 sm:$0xf] %vm42, %v41
  %s45 = scalar_lea.vmem %s1, 66
  %46 = vst.msk [vmem:[%s45] ss:$8 sm:$0xf0] %vm42, %v41
  %v47 = vld [vmem:[%s0] sm:$0xff]
  %48 = vrot.lane.b32.xlu0 %v47, 92
  %v49 = vpop.permute.xlu0 %48
  %vm50 = vcmask 97280
  %s51 = scalar_lea.vmem %s1, 3
  %52 = vst.msk [vmem:[%s51] ss:$8 sm:$0xf] %vm50, %v49
  %s53 = scalar_lea.vmem %s1, 3
  %54 = vst.msk [vmem:[%s53] ss:$8 sm:$0xf0] %vm50, %v49
  %s55 = scalar_lea.vmem %s0, 8
  %v56 = vld [vmem:[%s55] sm:$0xff]
  %57 = vrot.lane.b32.xlu0 %v56, 92
  %v58 = vpop.permute.xlu0 %57
  %vm59 = vcmask 97280
  %s60 = scalar_lea.vmem %s1, 67
  %61 = vst.msk [vmem:[%s60] ss:$8 sm:$0xf] %vm59, %v58
  %s62 = scalar_lea.vmem %s1, 67
  %63 = vst.msk [vmem:[%s62] ss:$8 sm:$0xf0] %vm59, %v58
  %v64 = vld [vmem:[%s0] sm:$0xff]
  %65 = vrot.lane.b32.xlu0 %v64, 80
  %v66 = vpop.permute.xlu0 %65
  %vm67 = vcmask 97280
  %s68 = scalar_lea.vmem %s1, 4
  %69 = vst.msk [vmem:[%s68] ss:$8 sm:$0xf] %vm67, %v66
  %s70 = scalar_lea.vmem %s1, 4
  %71 = vst.msk [vmem:[%s70] ss:$8 sm:$0xf0] %vm67, %v66
  %s72 = scalar_lea.vmem %s0, 8
  %v73 = vld [vmem:[%s72] sm:$0xff]
  %74 = vrot.lane.b32.xlu0 %v73, 80
  %v75 = vpop.permute.xlu0 %74
  %vm76 = vcmask 97280
  %s77 = scalar_lea.vmem %s1, 68
  %78 = vst.msk [vmem:[%s77] ss:$8 sm:$0xf] %vm76, %v75
  %s79 = scalar_lea.vmem %s1, 68
  %80 = vst.msk [vmem:[%s79] ss:$8 sm:$0xf0] %vm76, %v75
  %v81 = vld [vmem:[%s0] sm:$0xff]
  %82 = vrot.lane.b32.xlu0 %v81, 68
  %v83 = vpop.permute.xlu0 %82
  %vm84 = vcmask 97280
  %s85 = scalar_lea.vmem %s1, 5
  %86 = vst.msk [vmem:[%s85] ss:$8 sm:$0xf] %vm84, %v83
  %s87 = scalar_lea.vmem %s1, 5
  %88 = vst.msk [vmem:[%s87] ss:$8 sm:$0xf0] %vm84, %v83
  %s89 = scalar_lea.vmem %s0, 8
  %v90 = vld [vmem:[%s89] sm:$0xff]
  %91 = vrot.lane.b32.xlu0 %v90, 68
  %v92 = vpop.permute.xlu0 %91
  %vm93 = vcmask 97280
  %s94 = scalar_lea.vmem %s1, 69
  %95 = vst.msk [vmem:[%s94] ss:$8 sm:$0xf] %vm93, %v92
  %s96 = scalar_lea.vmem %s1, 69
  %97 = vst.msk [vmem:[%s96] ss:$8 sm:$0xf0] %vm93, %v92
  %v98 = vld [vmem:[%s0] sm:$0xff]
  %99 = vrot.lane.b32.xlu0 %v98, 56
  %v100 = vpop.permute.xlu0 %99
  %vm101 = vcmask 97280
  %s102 = scalar_lea.vmem %s1, 6
  %103 = vst.msk [vmem:[%s102] ss:$8 sm:$0xf] %vm101, %v100
  %s104 = scalar_lea.vmem %s1, 6
  %105 = vst.msk [vmem:[%s104] ss:$8 sm:$0xf0] %vm101, %v100
  %s106 = scalar_lea.vmem %s0, 8
  %v107 = vld [vmem:[%s106] sm:$0xff]
  %108 = vrot.lane.b32.xlu0 %v107, 56
  %v109 = vpop.permute.xlu0 %108
  %vm110 = vcmask 97280
  %s111 = scalar_lea.vmem %s1, 70
  %112 = vst.msk [vmem:[%s111] ss:$8 sm:$0xf] %vm110, %v109
  %s113 = scalar_lea.vmem %s1, 70
  %114 = vst.msk [vmem:[%s113] ss:$8 sm:$0xf0] %vm110, %v109
  %v115 = vld [vmem:[%s0] sm:$0xff]
  %116 = vrot.lane.b32.xlu0 %v115, 44
  %v117 = vpop.permute.xlu0 %116
  %vm118 = vcmask 97280
  %s119 = scalar_lea.vmem %s1, 7
  %120 = vst.msk [vmem:[%s119] ss:$8 sm:$0xf] %vm118, %v117
  %s121 = scalar_lea.vmem %s1, 7
  %122 = vst.msk [vmem:[%s121] ss:$8 sm:$0xf0] %vm118, %v117
  %s123 = scalar_lea.vmem %s0, 8
  %v124 = vld [vmem:[%s123] sm:$0xff]
  %125 = vrot.lane.b32.xlu0 %v124, 44
  %v126 = vpop.permute.xlu0 %125
  %vm127 = vcmask 97280
  %s128 = scalar_lea.vmem %s1, 71
  %129 = vst.msk [vmem:[%s128] ss:$8 sm:$0xf] %vm127, %v126
  %s130 = scalar_lea.vmem %s1, 71
  %131 = vst.msk [vmem:[%s130] ss:$8 sm:$0xf0] %vm127, %v126

// kernel: singular_trajectory_forward.1
$region0: #{singular_trajectory_forward.1}
  #allocation0 [shape = 'u32[]', space=smem, size = 0x4, offset = 0x4, fixed_abs, tag = 'smem constant byte address 0x4 - core index']
  #allocation1 [shape = 'u32[72,128]{1,0:T(1,128)}', space=vmem, size = 0x9000, scoped, tag = 'internal scratch']
  %s0 = inlined_call_operand.vmem [shape: f32[2,16,8], index: 0, kind: input, shape index: {}]
  %s1 = inlined_call_operand.vmem [shape: f32[2,16,96], index: 1, kind: input, shape index: {}]
  %s2 = inlined_call_operand.vmem [shape: f32[16,48], index: 2, kind: input, shape index: {}]
  %s3 = inlined_call_operand.vmem [shape: f32[40,24], index: 3, kind: input, shape index: {}]
  %s4 = inlined_call_operand.vmem [shape: f32[4,48,96], index: 4, kind: input, shape index: {}]
  %s5 = inlined_call_operand.vmem [shape: f32[9,32], index: 5, kind: input, shape index: {}]
  %s6 = inlined_call_operand.vmem [shape: f32[33,48], index: 6, kind: input, shape index: {}]
  %s7 = inlined_call_operand.vmem [shape: f32[6,48], index: 7, kind: input, shape index: {}]
  %s8 = inlined_call_operand.vmem [shape: f32[48,8], index: 8, kind: input, shape index: {}]
  %s9 = inlined_call_operand.vmem [shape: f32[96,16], index: 9, kind: input, shape index: {}]
  %s10 = inlined_call_operand.vmem [shape: f32[2,16,96], index: 10, kind: output, shape index: {0}]
  %s11 = inlined_call_operand.vmem [shape: f32[1,3], index: 11, kind: output, shape index: {1}]
  %12 = xla_tuple %s10, %s11
  %s13 = sld [smem:[#allocation0]]
  $region58: #{singular_trajectory_forward.1} parent=0
    _
  %s15 = ssub.s32 1, %s13
  %s16 = scalar_select 0, %s15, %s13
  // Predicated region
  $region2: #{singular_trajectory_forward.1} parent=0 // pred_check
    _
  $region3: #{singular_trajectory_forward.1} parent=0 // pred_check_branch
    %18 = sbr.rel (0) target = $region5
  $region4: #{singular_trajectory_forward.1} parent=0 // pred_region
    _
  $region5: #{singular_trajectory_forward.1} parent=0 // pred_fallthru
    _
  // Predicated region
  $region6: #{singular_trajectory_forward.1} parent=0 // pred_check
    _
  $region7: #{singular_trajectory_forward.1} parent=0 // pred_check_branch
    %20 = sbr.rel (0) target = $region9
  $region8: #{singular_trajectory_forward.1} parent=0 // pred_region
    _
  $region9: #{singular_trajectory_forward.1} parent=0 // pred_fallthru
    _
  // Predicated region
  $region10: #{singular_trajectory_forward.1} parent=0 // pred_check
    _
  $region11: #{singular_trajectory_forward.1} parent=0 // pred_check_branch
    %22 = sbr.rel (0) target = $region13
  $region12: #{singular_trajectory_forward.1} parent=0 // pred_region
    _
  $region13: #{singular_trajectory_forward.1} parent=0 // pred_fallthru
    _
  // Predicated region
  $region14: #{singular_trajectory_forward.1} parent=0 // pred_check
    _
  $region15: #{singular_trajectory_forward.1} parent=0 // pred_check_branch
    %24 = sbr.rel (0) target = $region17
  $region16: #{singular_trajectory_forward.1} parent=0 // pred_region
    _
  $region17: #{singular_trajectory_forward.1} parent=0 // pred_fallthru
    _
  // Predicated region
  $region18: #{singular_trajectory_forward.1} parent=0 // pred_check
    _
  $region19: #{singular_trajectory_forward.1} parent=0 // pred_check_branch
    %26 = sbr.rel (0) target = $region21
  $region20: #{singular_trajectory_forward.1} parent=0 // pred_region
    _
  $region21: #{singular_trajectory_forward.1} parent=0 // pred_fallthru
    _
  // Predicated region
  $region22: #{singular_trajectory_forward.1} parent=0 // pred_check
    _
  $region23: #{singular_trajectory_forward.1} parent=0 // pred_check_branch
    %28 = sbr.rel (0) target = $region25
  $region24: #{singular_trajectory_forward.1} parent=0 // pred_region
    _
  $region25: #{singular_trajectory_forward.1} parent=0 // pred_fallthru
    _
  // Predicated region
  $region26: #{singular_trajectory_forward.1} parent=0 // pred_check
    _
  $region27: #{singular_trajectory_forward.1} parent=0 // pred_check_branch
    %30 = sbr.rel (0) target = $region29
  $region28: #{singular_trajectory_forward.1} parent=0 // pred_region
    _
  $region29: #{singular_trajectory_forward.1} parent=0 // pred_fallthru
    _
  // Predicated region
  $region30: #{singular_trajectory_forward.1} parent=0 // pred_check
    _
  $region31: #{singular_trajectory_forward.1} parent=0 // pred_check_branch
    %32 = sbr.rel (0) target = $region33
  $region32: #{singular_trajectory_forward.1} parent=0 // pred_region
    _
  $region33: #{singular_trajectory_forward.1} parent=0 // pred_fallthru
    _
  // Predicated region
  $region34: #{singular_trajectory_forward.1} parent=0 // pred_check
    _
  $region35: #{singular_trajectory_forward.1} parent=0 // pred_check_branch
    %34 = sbr.rel (0) target = $region37
  $region36: #{singular_trajectory_forward.1} parent=0 // pred_region
    _
  $region37: #{singular_trajectory_forward.1} parent=0 // pred_fallthru
    _
  // Predicated region
  $region38: #{singular_trajectory_forward.1} parent=0 // pred_check
    _
  $region39: #{singular_trajectory_forward.1} parent=0 // pred_check_branch
    %36 = sbr.rel (0) target = $region41
  $region40: #{singular_trajectory_forward.1} parent=0 // pred_region
    _
  $region41: #{singular_trajectory_forward.1} parent=0 // pred_fallthru
    _
  %v37 = vld [vmem:[%s0] sm:$0xff]
  %v38 = vld [vmem:[%s0 + $0x8] sm:$0xff]
  %s39 = scalar_lea.vmem %s0, 16
  %v40 = vld [vmem:[%s39] sm:$0xff]
  %v41 = vld [vmem:[%s39 + $0x8] sm:$0xff]
  %v42 = vld [vmem:[%s1] sm:$0xff]
  %v43 = vld [vmem:[%s1 + $0x8] sm:$0xff]
  %s44 = scalar_lea.vmem %s1, 16
  %v45 = vld [vmem:[%s44] sm:$0xff]
  %v46 = vld [vmem:[%s44 + $0x8] sm:$0xff]
  %49 = vrot.lane.b32.xlu0 %v37, 2
  %v50 = vpop.permute.xlu0 %49
  %51 = vrot.lane.b32.xlu0 %v38, 2
  %v52 = vpop.permute.xlu0 %51
  %v55 = vsub.f32 %v37, %v50
  %v56 = vsub.f32 %v38, %v52
  %59 = vrot.lane.b32.xlu0 %v40, 2
  %v60 = vpop.permute.xlu0 %59
  %61 = vrot.lane.b32.xlu0 %v41, 2
  %v62 = vpop.permute.xlu0 %61
  %v65 = vsub.f32 %v40, %v60
  %v66 = vsub.f32 %v41, %v62
  %v67 = vmul.f32 %v55, %v55
  %v68 = vmul.f32 %v56, %v56
  %v69 = vmul.f32 %v65, %v65
  %v70 = vmul.f32 %v66, %v66
  %v71 = vadd.f32 %v67, %v69
  %v72 = vadd.f32 %v68, %v70
  %vm73 = vcmp.gt.f32.partialorder %v71, 0.36
  %vm74 = vcmp.gt.f32.partialorder %v72, 0.36
  %v75 = vmax.f32 %v71, 1e-12
  %v76 = vmax.f32 %v72, 1e-12
  %v77 = vrsqrt.pop %v75
  %v78 = vmul.f32 %v77, %v75
  %v79 = vmul.f32 %v78, %v77
  %v80 = vmul.f32 0.5, %v79
  %v81 = vsub.f32 1.5, %v80
  %v82 = vmul.f32 %v77, %v81
  %vm83 = vweird.f32 %v75
  %vm84 = vweird.f32 %v77
  %vm85 = vmor %vm83, %vm84
  %v86 = vsel %vm85, %v77, %v82
  %v87 = vrsqrt.pop %v76
  %v88 = vmul.f32 %v87, %v76
  %v89 = vmul.f32 %v88, %v87
  %v90 = vmul.f32 0.5, %v89
  %v91 = vsub.f32 1.5, %v90
  %v92 = vmul.f32 %v87, %v91
  %vm93 = vweird.f32 %v76
  %vm94 = vweird.f32 %v87
  %vm95 = vmor %vm93, %vm94
  %v96 = vsel %vm95, %v87, %v92
  %vm97 = vcmp.lt.f32.partialorder %v71, 1e-12
  %vm98 = vcmp.lt.f32.partialorder %v72, 1e-12
  %v99 = vmul.f32 %v55, %v86
  %v100 = vmul.f32 %v56, %v96
  %v101 = vsel %vm97, 1.0, %v99
  %v102 = vsel %vm98, 1.0, %v100
  %v103 = vmul.f32 %v65, %v86
  %v104 = vmul.f32 %v66, %v96
  %v105 = vsel %vm97, 0.0, %v103
  %v106 = vsel %vm98, 0.0, %v104
  %v107 = vmul.f32 %v86, 2.0
  %v108 = vmul.f32 %v96, 2.0
  %v109 = vmul.f32 %v71, 0.5
  %v110 = vmul.f32 %v72, 0.5
  %v111 = vmul.f32 %v109, %v86
  %v112 = vmul.f32 %v110, %v96
  %113 = vset.pattern.permute.xlu0 7
  %114 = vperm.xlu0 %113, %v37
  %v115 = vpop.permute.xlu0 %114
  %117 = vset.pattern.permute.xlu0 7
  %118 = vperm.xlu0 %117, %v38
  %v119 = vpop.permute.xlu0 %118
  %v121 = vsub.f32 %v37, %v115
  %v122 = vsub.f32 %v38, %v119
  %123 = vset.pattern.permute.xlu0 7
  %124 = vperm.xlu0 %123, %v40
  %v125 = vpop.permute.xlu0 %124
  %127 = vset.pattern.permute.xlu0 7
  %128 = vperm.xlu0 %127, %v41
  %v129 = vpop.permute.xlu0 %128
  %v131 = vsub.f32 %v40, %v125
  %v132 = vsub.f32 %v41, %v129
  %134 = vset.pattern.permute.xlu0 7
  %135 = vperm.xlu0 %134, %v101
  %v136 = vpop.permute.xlu0 %135
  %139 = vset.pattern.permute.xlu0 7
  %140 = vperm.xlu0 %139, %v102
  %v141 = vpop.permute.xlu0 %140
  %v143 = vmul.f32 %v121, %v136
  %v144 = vmul.f32 %v122, %v141
  %146 = vset.pattern.permute.xlu0 7
  %147 = vperm.xlu0 %146, %v105
  %v148 = vpop.permute.xlu0 %147
  %151 = vset.pattern.permute.xlu0 7
  %152 = vperm.xlu0 %151, %v106
  %v153 = vpop.permute.xlu0 %152
  %v155 = vmul.f32 %v131, %v148
  %v156 = vmul.f32 %v132, %v153
  %v157 = vadd.f32 %v143, %v155
  %v158 = vadd.f32 %v144, %v156
  %v159 = vsub.f32 0.0, %v121
  %v160 = vsub.f32 0.0, %v122
  %v161 = vmul.f32 %v159, %v148
  %v162 = vmul.f32 %v160, %v153
  %v163 = vmul.f32 %v131, %v136
  %v164 = vmul.f32 %v132, %v141
  %v165 = vadd.f32 %v161, %v163
  %v166 = vadd.f32 %v162, %v164
  %v167 = vsub.f32 %v42, %v115
  %v168 = vsub.f32 %v43, %v119
  %v169 = vsub.f32 %v45, %v125
  %v170 = vsub.f32 %v46, %v129
  %v171 = vmul.f32 %v167, %v136
  %v172 = vmul.f32 %v168, %v141
  %v173 = vmul.f32 %v169, %v148
  %v174 = vmul.f32 %v170, %v153
  %v175 = vadd.f32 %v171, %v173
  %v176 = vadd.f32 %v172, %v174
  %v177 = vsub.f32 0.0, %v167
  %v178 = vsub.f32 0.0, %v168
  %v179 = vmul.f32 %v177, %v148
  %v180 = vmul.f32 %v178, %v153
  %v181 = vmul.f32 %v169, %v136
  %v182 = vmul.f32 %v170, %v141
  %v183 = vadd.f32 %v179, %v181
  %v184 = vadd.f32 %v180, %v182
  %187 = vrot.lane.b32.xlu0 %v165, 8
  %v188 = vpop.permute.xlu0 %187
  %189 = vrot.lane.b32.xlu0 %v166, 8
  %v190 = vpop.permute.xlu0 %189
  %195 = vrot.lane.b32.xlu0 %v175, 16
  %v196 = vpop.permute.xlu0 %195
  %197 = vrot.lane.b32.xlu0 %v176, 16
  %v198 = vpop.permute.xlu0 %197
  %203 = vrot.lane.b32.xlu0 %v183, 28
  %v204 = vpop.permute.xlu0 %203
  %205 = vrot.lane.b32.xlu0 %v184, 28
  %v206 = vpop.permute.xlu0 %205
  %vm209 = vcmask 64512
  %v210 = vsel %vm209, %v157, %v188
  %v211 = vsel %vm209, %v158, %v190
  %vm212 = vcmask 130048
  %v213 = vsel %vm212, %v210, %v196
  %v214 = vsel %vm212, %v211, %v198
  %vm215 = vcmask 228352
  %v216 = vsel %vm215, %v213, %v204
  %v217 = vsel %vm215, %v214, %v206
  %v218 = vld [vmem:[%s3] sm:$0xff]
  %v219 = vld [vmem:[%s3 + $0x8] sm:$0xff]
  %v220 = vld [vmem:[%s3 + $0x10] sm:$0xff]
  %v221 = vld [vmem:[%s3 + $0x18] sm:$0xff]
  %v222 = vld [vmem:[%s3 + $0x20] sm:$0xff]
  %vm223 = vcmask 326656
  %v225 = vsel %vm223, %v216, 0
  %v228 = vsel %vm223, %v217, 0
  %230 = vmatpush.msra.mxu0 0.0
  %231 = vmatpush.msra.mxu0 0.0
  %232 = vmatpush.msra.mxu0 0.0
  %233 = vmatpush.msra.mxu0 0.0
  %234 = vmatpush.msra.mxu0 0.0
  %235 = vmatpush.msra.mxu0 0.0
  %236 = vmatpush.msra.mxu0 0.0
  %237 = vmatpush.msra.mxu0 0.0
  %238 = vmatpush.msra.mxu0 0.0
  %239 = vmatpush.msra.mxu0 0.0
  %240 = vmatpush.msra.mxu0 0.0
  %241 = vmatpush.msra.mxu0 %v222
  %242 = vmatpush.msra.mxu0 %v221
  %243 = vmatpush.msra.mxu0 %v220
  %244 = vmatpush.msra.mxu0 %v219
  %245 = vmatpush.msra.mxu0 %v218
  %246 = vmatmul.f32.gmra.mxu0 %v225
  %v247 = vpop.f32.mrf.mxu0
  %v248 = vadd.f32 0.0, %v247
  %249 = vmatmul.f32.gmra.mxu0 %v228
  %v250 = vpop.f32.mrf.mxu0
  %v251 = vadd.f32 0.0, %v250
  %252 = vdwg.mxu0
  %254 = vset.pattern.permute.xlu0 7
  %255 = vperm.xlu0 %254, %v107
  %v256 = vpop.permute.xlu0 %255
  %259 = vset.pattern.permute.xlu0 7
  %260 = vperm.xlu0 %259, %v108
  %v261 = vpop.permute.xlu0 %260
  %v263 = vmul.f32 %v256, %v248
  %v264 = vmul.f32 %v261, %v251
  %v265 = vsel %vm73, 1, 0
  %v266 = vsel %vm74, 1, 0
  %267 = vset.pattern.permute.xlu0 7
  %268 = vperm.xlu0 %267, %v265
  %v269 = vpop.permute.xlu0 %268
  %270 = vset.pattern.permute.xlu0 7
  %271 = vperm.xlu0 %270, %v266
  %v272 = vpop.permute.xlu0 %271
  %vm273 = vcmp.eq.s32.totalorder %v269, 1
  %vm274 = vcmp.eq.s32.totalorder %v272, 1
  %277 = vrot.lane.b32.xlu0 %v248, 122
  %v278 = vpop.permute.xlu0 %277
  %279 = vrot.lane.b32.xlu0 %v251, 122
  %v280 = vpop.permute.xlu0 %279
  %v283 = vsel %vm273, %v263, %v278
  %v284 = vsel %vm274, %v264, %v280
  %285 = vrot.lane.b32.xlu0 %v37, 121
  %v286 = vpop.permute.xlu0 %285
  %287 = vrot.lane.b32.xlu0 %v38, 121
  %v288 = vpop.permute.xlu0 %287
  %vm291 = vcmask 7168
  %v292 = vsel %vm291, %v286, 0.0
  %v293 = vsel %vm291, %v288, 0.0
  %v294 = vadd.f32 %v292, %v293
  %295 = vadd.xlane.f32.xlu0 %v294
  %v296 = vpop.xlane.xlu0 %295
  %v297 = vrot.slane %v296, 4
  %v298 = vadd.f32 %v296, %v297
  %v299 = vrot.slane %v298, 2
  %v300 = vadd.f32 %v298, %v299
  %v301 = vrot.slane %v300, 1
  %v302 = vadd.f32 %v300, %v301
  %s303 = vtos %v302
  %v304 = vrcp.pop 16.0
  %v305 = vmul.f32 16.0, %v304
  %v306 = vsub.f32 1.0, %v305
  %v307 = vmul.f32 %v304, %v306
  %v308 = vadd.f32 %v304, %v307
  %vm309 = vweird.f32 %v304
  %v310 = vsel %vm309, %v304, %v308
  %s311 = vtos %v310
  %s312 = smul.f32 %s303, %s311
  %v313 = vstv %s312
  %v314 = vsub.f32 %v37, %v313
  %v315 = vsub.f32 %v38, %v313
  %316 = vrot.lane.b32.xlu0 %v40, 121
  %v317 = vpop.permute.xlu0 %316
  %318 = vrot.lane.b32.xlu0 %v41, 121
  %v319 = vpop.permute.xlu0 %318
  %v322 = vsel %vm291, %v317, 0.0
  %v323 = vsel %vm291, %v319, 0.0
  %v324 = vadd.f32 %v322, %v323
  %325 = vadd.xlane.f32.xlu0 %v324
  %v326 = vpop.xlane.xlu0 %325
  %v327 = vrot.slane %v326, 4
  %v328 = vadd.f32 %v326, %v327
  %v329 = vrot.slane %v328, 2
  %v330 = vadd.f32 %v328, %v329
  %v331 = vrot.slane %v330, 1
  %v332 = vadd.f32 %v330, %v331
  %s333 = vtos %v332
  %v334 = vrcp.pop 16.0
  %v335 = vmul.f32 16.0, %v334
  %v336 = vsub.f32 1.0, %v335
  %v337 = vmul.f32 %v334, %v336
  %v338 = vadd.f32 %v334, %v337
  %vm339 = vweird.f32 %v334
  %v340 = vsel %vm339, %v334, %v338
  %s341 = vtos %v340
  %s342 = smul.f32 %s333, %s341
  %v343 = vstv %s342
  %v344 = vsub.f32 %v40, %v343
  %v345 = vsub.f32 %v41, %v343
  %348 = vrot.lane.b32.xlu0 %v314, 127
  %v349 = vpop.permute.xlu0 %348
  %350 = vrot.lane.b32.xlu0 %v315, 127
  %v351 = vpop.permute.xlu0 %350
  %vm354 = vcmask 48128
  %v355 = vsel %vm354, %v283, %v349
  %v356 = vsel %vm354, %v284, %v351
  %vm357 = vcmask 56320
  %v358 = vsel %vm357, %v355, %v344
  %v359 = vsel %vm357, %v356, %v345
  %v360 = vsel %vm209, %v358, 1.0
  %v361 = vsel %vm209, %v359, 1.0
  %v362 = vld [vmem:[%s5] sm:$0xff]
  %v363 = vld [vmem:[%s5 + $0x8] sm:$0x1]
  %vm364 = vcmask 72704
  %v366 = vsel %vm364, %v360, 0
  %v369 = vsel %vm364, %v361, 0
  %vm371 = vcmask 1040384
  %v373 = vsel %vm371, %v363, 0
  %375 = vmatpush.msra.mxu0 0.0
  %376 = vmatpush.msra.mxu0 0.0
  %377 = vmatpush.msra.mxu0 0.0
  %378 = vmatpush.msra.mxu0 0.0
  %379 = vmatpush.msra.mxu0 0.0
  %380 = vmatpush.msra.mxu0 0.0
  %381 = vmatpush.msra.mxu0 0.0
  %382 = vmatpush.msra.mxu0 0.0
  %383 = vmatpush.msra.mxu0 0.0
  %384 = vmatpush.msra.mxu0 0.0
  %385 = vmatpush.msra.mxu0 0.0
  %386 = vmatpush.msra.mxu0 0.0
  %387 = vmatpush.msra.mxu0 0.0
  %388 = vmatpush.msra.mxu0 0.0
  %389 = vmatpush.msra.mxu0 %v373
  %390 = vmatpush.msra.mxu0 %v362
  %391 = vmatmul.f32.gmra.mxu0 %v366
  %v392 = vpop.f32.mrf.mxu0
  %v393 = vadd.f32 0.0, %v392
  %394 = vmatmul.f32.gmra.mxu0 %v369
  %v395 = vpop.f32.mrf.mxu0
  %v396 = vadd.f32 0.0, %v395
  %397 = vdwg.mxu0
  %v398 = vmax.f32 %v393, 0.0
  %v399 = vmax.f32 %v396, 0.0
  %vm400 = vcmask 261120
  %v401 = vsel %vm400, %v398, 1.0
  %v402 = vsel %vm400, %v399, 1.0
  %v403 = vld [vmem:[%s6] sm:$0xff]
  %v404 = vld [vmem:[%s6 + $0x8] sm:$0xff]
  %v405 = vld [vmem:[%s6 + $0x10] sm:$0xff]
  %v406 = vld [vmem:[%s6 + $0x18] sm:$0xff]
  %v407 = vld [vmem:[%s6 + $0x20] sm:$0x1]
  %vm408 = vcmask 269312
  %v410 = vsel %vm408, %v401, 0
  %v413 = vsel %vm408, %v402, 0
  %v416 = vsel %vm371, %v407, 0
  %418 = vmatpush.msra.mxu0 0.0
  %419 = vmatpush.msra.mxu0 0.0
  %420 = vmatpush.msra.mxu0 0.0
  %421 = vmatpush.msra.mxu0 0.0
  %422 = vmatpush.msra.mxu0 0.0
  %423 = vmatpush.msra.mxu0 0.0
  %424 = vmatpush.msra.mxu0 0.0
  %425 = vmatpush.msra.mxu0 0.0
  %426 = vmatpush.msra.mxu0 0.0
  %427 = vmatpush.msra.mxu0 0.0
  %428 = vmatpush.msra.mxu0 0.0
  %429 = vmatpush.msra.mxu0 %v416
  %430 = vmatpush.msra.mxu0 %v406
  %431 = vmatpush.msra.mxu0 %v405
  %432 = vmatpush.msra.mxu0 %v404
  %433 = vmatpush.msra.mxu0 %v403
  %434 = vmatmul.f32.gmra.mxu0 %v410
  %v435 = vpop.f32.mrf.mxu0
  %v436 = vadd.f32 0.0, %v435
  %437 = vmatmul.f32.gmra.mxu0 %v413
  %v438 = vpop.f32.mrf.mxu0
  %v439 = vadd.f32 0.0, %v438
  %440 = vdwg.mxu0
  %v441 = vld [vmem:[%s2] sm:$0xff]
  %v442 = vld [vmem:[%s2 + $0x8] sm:$0xff]
  %v443 = vadd.f32 %v441, %v436
  %v444 = vadd.f32 %v442, %v439
  %v445 = vld [vmem:[%s4] sm:$0xff]
  %v446 = vld [vmem:[%s4 + $0x8] sm:$0xff]
  %v447 = vld [vmem:[%s4 + $0x10] sm:$0xff]
  %v448 = vld [vmem:[%s4 + $0x18] sm:$0xff]
  %v449 = vld [vmem:[%s4 + $0x20] sm:$0xff]
  %v450 = vld [vmem:[%s4 + $0x28] sm:$0xff]
  %vm451 = vcmask 392192
  %v453 = vsel %vm451, %v443, 0
  %v456 = vsel %vm451, %v444, 0
  %458 = vmatpush.msra.mxu0 0.0
  %459 = vmatpush.msra.mxu0 0.0
  %460 = vmatpush.msra.mxu0 0.0
  %461 = vmatpush.msra.mxu0 0.0
  %462 = vmatpush.msra.mxu0 0.0
  %463 = vmatpush.msra.mxu0 0.0
  %464 = vmatpush.msra.mxu0 0.0
  %465 = vmatpush.msra.mxu0 0.0
  %466 = vmatpush.msra.mxu0 0.0
  %467 = vmatpush.msra.mxu0 0.0
  %468 = vmatpush.msra.mxu0 %v450
  %469 = vmatpush.msra.mxu0 %v449
  %470 = vmatpush.msra.mxu0 %v448
  %471 = vmatpush.msra.mxu0 %v447
  %472 = vmatpush.msra.mxu0 %v446
  %473 = vmatpush.msra.mxu0 %v445
  %474 = vmatmul.f32.gmra.mxu0 %v453
  %v475 = vpop.f32.mrf.mxu0
  %v476 = vadd.f32 0.0, %v475
  %477 = vmatmul.f32.gmra.mxu0 %v456
  %v478 = vpop.f32.mrf.mxu0
  %v479 = vadd.f32 0.0, %v478
  %480 = vdwg.mxu0
  %s481 = scalar_lea.vmem %s4, 48
  %v482 = vld [vmem:[%s481] sm:$0xff]
  %v483 = vld [vmem:[%s481 + $0x8] sm:$0xff]
  %v484 = vld [vmem:[%s481 + $0x10] sm:$0xff]
  %v485 = vld [vmem:[%s481 + $0x18] sm:$0xff]
  %v486 = vld [vmem:[%s481 + $0x20] sm:$0xff]
  %v487 = vld [vmem:[%s481 + $0x28] sm:$0xff]
  %488 = vmatpush.msra.mxu0 0.0
  %489 = vmatpush.msra.mxu0 0.0
  %490 = vmatpush.msra.mxu0 0.0
  %491 = vmatpush.msra.mxu0 0.0
  %492 = vmatpush.msra.mxu0 0.0
  %493 = vmatpush.msra.mxu0 0.0
  %494 = vmatpush.msra.mxu0 0.0
  %495 = vmatpush.msra.mxu0 0.0
  %496 = vmatpush.msra.mxu0 0.0
  %497 = vmatpush.msra.mxu0 0.0
  %498 = vmatpush.msra.mxu0 %v487
  %499 = vmatpush.msra.mxu0 %v486
  %500 = vmatpush.msra.mxu0 %v485
  %501 = vmatpush.msra.mxu0 %v484
  %502 = vmatpush.msra.mxu0 %v483
  %503 = vmatpush.msra.mxu0 %v482
  %504 = vmatmul.f32.gmra.mxu0 %v453
  %v505 = vpop.f32.mrf.mxu0
  %v506 = vadd.f32 0.0, %v505
  %507 = vmatmul.f32.gmra.mxu0 %v456
  %v508 = vpop.f32.mrf.mxu0
  %v509 = vadd.f32 0.0, %v508
  %510 = vdwg.mxu0
  %s511 = scalar_lea.vmem %s4, 96
  %v512 = vld [vmem:[%s511] sm:$0xff]
  %v513 = vld [vmem:[%s511 + $0x8] sm:$0xff]
  %v514 = vld [vmem:[%s511 + $0x10] sm:$0xff]
  %v515 = vld [vmem:[%s511 + $0x18] sm:$0xff]
  %v516 = vld [vmem:[%s511 + $0x20] sm:$0xff]
  %v517 = vld [vmem:[%s511 + $0x28] sm:$0xff]
  %518 = vmatpush.msra.mxu0 0.0
  %519 = vmatpush.msra.mxu0 0.0
  %520 = vmatpush.msra.mxu0 0.0
  %521 = vmatpush.msra.mxu0 0.0
  %522 = vmatpush.msra.mxu0 0.0
  %523 = vmatpush.msra.mxu0 0.0
  %524 = vmatpush.msra.mxu0 0.0
  %525 = vmatpush.msra.mxu0 0.0
  %526 = vmatpush.msra.mxu0 0.0
  %527 = vmatpush.msra.mxu0 0.0
  %528 = vmatpush.msra.mxu0 %v517
  %529 = vmatpush.msra.mxu0 %v516
  %530 = vmatpush.msra.mxu0 %v515
  %531 = vmatpush.msra.mxu0 %v514
  %532 = vmatpush.msra.mxu0 %v513
  %533 = vmatpush.msra.mxu0 %v512
  %534 = vmatmul.f32.gmra.mxu0 %v453
  %v535 = vpop.f32.mrf.mxu0
  %v536 = vadd.f32 0.0, %v535
  %537 = vmatmul.f32.gmra.mxu0 %v456
  %v538 = vpop.f32.mrf.mxu0
  %v539 = vadd.f32 0.0, %v538
  %540 = vdwg.mxu0
  %s541 = scalar_lea.vmem %s4, 144
  %v542 = vld [vmem:[%s541] sm:$0xff]
  %v543 = vld [vmem:[%s541 + $0x8] sm:$0xff]
  %v544 = vld [vmem:[%s541 + $0x10] sm:$0xff]
  %v545 = vld [vmem:[%s541 + $0x18] sm:$0xff]
  %v546 = vld [vmem:[%s541 + $0x20] sm:$0xff]
  %v547 = vld [vmem:[%s541 + $0x28] sm:$0xff]
  %548 = vmatpush.msra.mxu0 0.0
  %549 = vmatpush.msra.mxu0 0.0
  %550 = vmatpush.msra.mxu0 0.0
  %551 = vmatpush.msra.mxu0 0.0
  %552 = vmatpush.msra.mxu0 0.0
  %553 = vmatpush.msra.mxu0 0.0
  %554 = vmatpush.msra.mxu0 0.0
  %555 = vmatpush.msra.mxu0 0.0
  %556 = vmatpush.msra.mxu0 0.0
  %557 = vmatpush.msra.mxu0 0.0
  %558 = vmatpush.msra.mxu0 %v547
  %559 = vmatpush.msra.mxu0 %v546
  %560 = vmatpush.msra.mxu0 %v545
  %561 = vmatpush.msra.mxu0 %v544
  %562 = vmatpush.msra.mxu0 %v543
  %563 = vmatpush.msra.mxu0 %v542
  %564 = vmatmul.f32.gmra.mxu0 %v453
  %v565 = vpop.f32.mrf.mxu0
  %v566 = vadd.f32 0.0, %v565
  %567 = vmatmul.f32.gmra.mxu0 %v456
  %v568 = vpop.f32.mrf.mxu0
  %v569 = vadd.f32 0.0, %v568
  %570 = vdwg.mxu0
  %v571 = vmul.f32 %v101, %v111
  %v572 = vmul.f32 %v102, %v112
  %v573 = vmul.f32 %v105, %v111
  %v574 = vmul.f32 %v106, %v112
  %576 = vset.pattern.permute.xlu0 7
  %577 = vperm.xlu0 %576, %v571
  %v578 = vpop.permute.xlu0 %577
  %581 = vset.pattern.permute.xlu0 7
  %582 = vperm.xlu0 %581, %v572
  %v583 = vpop.permute.xlu0 %582
  %v585 = vmul.f32 %v476, %v578
  %v586 = vmul.f32 %v479, %v583
  %588 = vset.pattern.permute.xlu0 7
  %589 = vperm.xlu0 %588, %v573
  %v590 = vpop.permute.xlu0 %589
  %593 = vset.pattern.permute.xlu0 7
  %594 = vperm.xlu0 %593, %v574
  %v595 = vpop.permute.xlu0 %594
  %v597 = vmul.f32 %v506, %v590
  %v598 = vmul.f32 %v509, %v595
  %v599 = vsub.f32 %v585, %v597
  %v600 = vsub.f32 %v586, %v598
  %v601 = vadd.f32 %v599, %v115
  %v602 = vadd.f32 %v600, %v119
  %v603 = vmul.f32 %v476, %v590
  %v604 = vmul.f32 %v479, %v595
  %v605 = vmul.f32 %v506, %v578
  %v606 = vmul.f32 %v509, %v583
  %v607 = vadd.f32 %v603, %v605
  %v608 = vadd.f32 %v604, %v606
  %v609 = vadd.f32 %v607, %v125
  %v610 = vadd.f32 %v608, %v129
  %v611 = vmul.f32 %v536, %v136
  %v612 = vmul.f32 %v539, %v141
  %v613 = vmul.f32 %v566, %v148
  %v614 = vmul.f32 %v569, %v153
  %v615 = vsub.f32 %v611, %v613
  %v616 = vsub.f32 %v612, %v614
  %v617 = vadd.f32 %v615, %v115
  %v618 = vadd.f32 %v616, %v119
  %v619 = vmul.f32 %v536, %v148
  %v620 = vmul.f32 %v539, %v153
  %v621 = vmul.f32 %v566, %v136
  %v622 = vmul.f32 %v569, %v141
  %v623 = vadd.f32 %v619, %v621
  %v624 = vadd.f32 %v620, %v622
  %v625 = vadd.f32 %v623, %v125
  %v626 = vadd.f32 %v624, %v129
  %v627 = vsel %vm273, %v601, %v617
  %v628 = vsel %vm274, %v602, %v618
  %v629 = vsel %vm273, %v609, %v625
  %v630 = vsel %vm274, %v610, %v626
  %vm631 = vcmask 785408
  %632 = vst.msk [vmem:[%s10] sm:$0xff] %vm631, %v627
  %633 = vst.msk [vmem:[%s10 + $0x8] sm:$0xff] %vm631, %v628
  %s634 = scalar_lea.vmem %s10, 16
  %635 = vst.msk [vmem:[%s634] sm:$0xff] %vm631, %v629
  %636 = vst.msk [vmem:[%s634 + $0x8] sm:$0xff] %vm631, %v630
  %v637 = vld [vmem:[%s7] sm:$0x3f]
  %640 = vrot.lane.b32.xlu0 %v283, 116
  %v641 = vpop.permute.xlu0 %640
  %642 = vrot.lane.b32.xlu0 %v284, 116
  %v643 = vpop.permute.xlu0 %642
  %v644 = vsel %vm354, %v641, 0
  %v646 = vsel %vm354, %v643, 0
  %vm648 = vcmask 1045504
  %v650 = vsel %vm648, %v637, 0
  %652 = vmatpush.msra.mxu0 0.0
  %653 = vmatpush.msra.mxu0 0.0
  %654 = vmatpush.msra.mxu0 0.0
  %655 = vmatpush.msra.mxu0 0.0
  %656 = vmatpush.msra.mxu0 0.0
  %657 = vmatpush.msra.mxu0 0.0
  %658 = vmatpush.msra.mxu0 0.0
  %659 = vmatpush.msra.mxu0 0.0
  %660 = vmatpush.msra.mxu0 0.0
  %661 = vmatpush.msra.mxu0 0.0
  %662 = vmatpush.msra.mxu0 0.0
  %663 = vmatpush.msra.mxu0 0.0
  %664 = vmatpush.msra.mxu0 0.0
  %665 = vmatpush.msra.mxu0 0.0
  %666 = vmatpush.msra.mxu0 0.0
  %667 = vmatpush.msra.mxu0 %v650
  %668 = vmatmul.f32.gmra.mxu0 %v644
  %v669 = vpop.f32.mrf.mxu0
  %v670 = vadd.f32 0.0, %v669
  %671 = vmatmul.f32.gmra.mxu0 %v646
  %v672 = vpop.f32.mrf.mxu0
  %v673 = vadd.f32 0.0, %v672
  %674 = vdwg.mxu0
  %v675 = vsub.f32 %v443, %v670
  %v676 = vsub.f32 %v444, %v673
  %v677 = vmul.f32 %v675, %v675
  %v678 = vmul.f32 %v676, %v676
  %v679 = vld [vmem:[%s8] sm:$0xff]
  %v680 = vld [vmem:[%s8 + $0x8] sm:$0xff]
  %v681 = vld [vmem:[%s8 + $0x10] sm:$0xff]
  %v682 = vld [vmem:[%s8 + $0x18] sm:$0xff]
  %v683 = vld [vmem:[%s8 + $0x20] sm:$0xff]
  %v684 = vld [vmem:[%s8 + $0x28] sm:$0xff]
  %v686 = vsel %vm451, %v677, 0
  %v689 = vsel %vm451, %v678, 0
  %691 = vmatpush.msra.mxu0 0.0
  %692 = vmatpush.msra.mxu0 0.0
  %693 = vmatpush.msra.mxu0 0.0
  %694 = vmatpush.msra.mxu0 0.0
  %695 = vmatpush.msra.mxu0 0.0
  %696 = vmatpush.msra.mxu0 0.0
  %697 = vmatpush.msra.mxu0 0.0
  %698 = vmatpush.msra.mxu0 0.0
  %699 = vmatpush.msra.mxu0 0.0
  %700 = vmatpush.msra.mxu0 0.0
  %701 = vmatpush.msra.mxu0 %v684
  %702 = vmatpush.msra.mxu0 %v683
  %703 = vmatpush.msra.mxu0 %v682
  %704 = vmatpush.msra.mxu0 %v681
  %705 = vmatpush.msra.mxu0 %v680
  %706 = vmatpush.msra.mxu0 %v679
  %707 = vmatmul.f32.gmra.mxu0 %v686
  %v708 = vpop.f32.mrf.mxu0
  %v709 = vadd.f32 0.0, %v708
  %710 = vmatmul.f32.gmra.mxu0 %v689
  %v711 = vpop.f32.mrf.mxu0
  %v712 = vadd.f32 0.0, %v711
  %713 = vdwg.mxu0
  %v714 = vsel %vm209, %v709, inf
  %715 = vmin.xlane.f32.xlu0 %v714
  %v716 = vpop.xlane.xlu0 %715
  %v717 = vsel %vm209, %v712, inf
  %718 = vmin.xlane.f32.xlu0 %v717
  %v719 = vpop.xlane.xlu0 %718
  %v720 = vrsqrt.pop %v716
  %v721 = vmul.f32 %v720, %v716
  %v722 = vmul.f32 %v721, %v720
  %v723 = vmul.f32 0.5, %v722
  %v724 = vsub.f32 1.5, %v723
  %v725 = vmul.f32 %v720, %v724
  %v726 = vmul.f32 %v716, %v725
  %vm727 = vcmp.eq.f32.partialorder %v716, inf
  %v728 = vsel %vm727, %v716, %v726
  %vm729 = vcmp.eq.f32.partialorder %v716, 0.0
  %v730 = vand.u32 %v716, 2147483648
  %v731 = vsel %vm729, %v730, %v728
  %v732 = vrsqrt.pop %v719
  %v733 = vmul.f32 %v732, %v719
  %v734 = vmul.f32 %v733, %v732
  %v735 = vmul.f32 0.5, %v734
  %v736 = vsub.f32 1.5, %v735
  %v737 = vmul.f32 %v732, %v736
  %v738 = vmul.f32 %v719, %v737
  %vm739 = vcmp.eq.f32.partialorder %v719, inf
  %v740 = vsel %vm739, %v719, %v738
  %vm741 = vcmp.eq.f32.partialorder %v719, 0.0
  %v742 = vand.u32 %v719, 2147483648
  %v743 = vsel %vm741, %v742, %v740
  %v744 = vsel %vm291, %v731, 0.0
  %v745 = vsel %vm291, %v743, 0.0
  %v746 = vadd.f32 %v744, %v745
  %747 = vadd.xlane.f32.xlu0 %v746
  %v748 = vpop.xlane.xlu0 %747
  %v749 = vrot.slane %v748, 4
  %v750 = vadd.f32 %v748, %v749
  %v751 = vrot.slane %v750, 2
  %v752 = vadd.f32 %v750, %v751
  %v753 = vrot.slane %v752, 1
  %v754 = vadd.f32 %v752, %v753
  %s755 = vtos %v754
  %v756 = vstv %s755
  %v757 = vrcp.pop 16.0
  %v758 = vmul.f32 16.0, %v757
  %v759 = vsub.f32 1.0, %v758
  %v760 = vmul.f32 %v757, %v759
  %v761 = vadd.f32 %v757, %v760
  %vm762 = vweird.f32 %v757
  %v763 = vsel %vm762, %v757, %v761
  %v764 = vmul.f32 %v756, %v763
  %v765 = vsub.f32 %v627, %v42
  %v766 = vsub.f32 %v628, %v43
  %v767 = vsub.f32 %v629, %v45
  %v768 = vsub.f32 %v630, %v46
  %v769 = vmul.f32 %v765, %v765
  %v770 = vmul.f32 %v766, %v766
  %v771 = vmul.f32 %v767, %v767
  %v772 = vmul.f32 %v768, %v768
  %v773 = vadd.f32 %v769, %v771
  %v774 = vadd.f32 %v770, %v772
  %v775 = vrsqrt.pop %v773
  %v776 = vmul.f32 %v775, %v773
  %v777 = vmul.f32 %v776, %v775
  %v778 = vmul.f32 0.5, %v777
  %v779 = vsub.f32 1.5, %v778
  %v780 = vmul.f32 %v775, %v779
  %v781 = vmul.f32 %v773, %v780
  %vm782 = vcmp.eq.f32.partialorder %v773, inf
  %v783 = vsel %vm782, %v773, %v781
  %vm784 = vcmp.eq.f32.partialorder %v773, 0.0
  %v785 = vand.u32 %v773, 2147483648
  %v786 = vsel %vm784, %v785, %v783
  %v787 = vrsqrt.pop %v774
  %v788 = vmul.f32 %v787, %v774
  %v789 = vmul.f32 %v788, %v787
  %v790 = vmul.f32 0.5, %v789
  %v791 = vsub.f32 1.5, %v790
  %v792 = vmul.f32 %v787, %v791
  %v793 = vmul.f32 %v774, %v792
  %vm794 = vcmp.eq.f32.partialorder %v774, inf
  %v795 = vsel %vm794, %v774, %v793
  %vm796 = vcmp.eq.f32.partialorder %v774, 0.0
  %v797 = vand.u32 %v774, 2147483648
  %v798 = vsel %vm796, %v797, %v795
  %v799 = vld [vmem:[%s9] sm:$0xff]
  %v800 = vld [vmem:[%s9 + $0x8] sm:$0xff]
  %v801 = vld [vmem:[%s9 + $0x10] sm:$0xff]
  %v802 = vld [vmem:[%s9 + $0x18] sm:$0xff]
  %v803 = vld [vmem:[%s9 + $0x20] sm:$0xff]
  %v804 = vld [vmem:[%s9 + $0x28] sm:$0xff]
  %v805 = vld [vmem:[%s9 + $0x30] sm:$0xff]
  %v806 = vld [vmem:[%s9 + $0x38] sm:$0xff]
  %v807 = vld [vmem:[%s9 + $0x40] sm:$0xff]
  %v808 = vld [vmem:[%s9 + $0x48] sm:$0xff]
  %v809 = vld [vmem:[%s9 + $0x50] sm:$0xff]
  %v810 = vld [vmem:[%s9 + $0x58] sm:$0xff]
  %v812 = vsel %vm631, %v786, 0
  %v815 = vsel %vm631, %v798, 0
  %817 = vmatpush.msra.mxu0 0.0
  %818 = vmatpush.msra.mxu0 0.0
  %819 = vmatpush.msra.mxu0 0.0
  %820 = vmatpush.msra.mxu0 0.0
  %821 = vmatpush.msra.mxu0 %v810
  %822 = vmatpush.msra.mxu0 %v809
  %823 = vmatpush.msra.mxu0 %v808
  %824 = vmatpush.msra.mxu0 %v807
  %825 = vmatpush.msra.mxu0 %v806
  %826 = vmatpush.msra.mxu0 %v805
  %827 = vmatpush.msra.mxu0 %v804
  %828 = vmatpush.msra.mxu0 %v803
  %829 = vmatpush.msra.mxu0 %v802
  %830 = vmatpush.msra.mxu0 %v801
  %831 = vmatpush.msra.mxu0 %v800
  %832 = vmatpush.msra.mxu0 %v799
  %833 = vmatmul.f32.gmra.mxu0 %v812
  %v834 = vpop.f32.mrf.mxu0
  %v835 = vadd.f32 0.0, %v834
  %836 = vmatmul.f32.gmra.mxu0 %v815
  %v837 = vpop.f32.mrf.mxu0
  %v838 = vadd.f32 0.0, %v837
  %839 = vdwg.mxu0
  %v840 = vsel %vm209, %v835, inf
  %841 = vmin.xlane.f32.xlu0 %v840
  %v842 = vpop.xlane.xlu0 %841
  %v843 = vsel %vm209, %v838, inf
  %844 = vmin.xlane.f32.xlu0 %v843
  %v845 = vpop.xlane.xlu0 %844
  %v846 = vsel %vm291, %v842, 0.0
  %v847 = vsel %vm291, %v845, 0.0
  %v848 = vadd.f32 %v846, %v847
  %849 = vadd.xlane.f32.xlu0 %v848
  %v850 = vpop.xlane.xlu0 %849
  %v851 = vrot.slane %v850, 4
  %v852 = vadd.f32 %v850, %v851
  %v853 = vrot.slane %v852, 2
  %v854 = vadd.f32 %v852, %v853
  %v855 = vrot.slane %v854, 1
  %v856 = vadd.f32 %v854, %v855
  %s857 = vtos %v856
  %v858 = vstv %s857
  %v859 = vmul.f32 %v858, %v763
  %vm860 = vcmask 130112
  %v861 = vsel %vm860, %v835, inf
  %862 = vmin.xlane.f32.xlu0 %v861
  %v863 = vpop.xlane.xlu0 %862
  %v864 = vsel %vm860, %v838, inf
  %865 = vmin.xlane.f32.xlu0 %v864
  %v866 = vpop.xlane.xlu0 %865
  %v867 = vsel %vm291, %v863, 0.0
  %v868 = vsel %vm291, %v866, 0.0
  %v869 = vadd.f32 %v867, %v868
  %870 = vadd.xlane.f32.xlu0 %v869
  %v871 = vpop.xlane.xlu0 %870
  %v872 = vrot.slane %v871, 4
  %v873 = vadd.f32 %v871, %v872
  %v874 = vrot.slane %v873, 2
  %v875 = vadd.f32 %v873, %v874
  %v876 = vrot.slane %v875, 1
  %v877 = vadd.f32 %v875, %v876
  %s878 = vtos %v877
  %v879 = vstv %s878
  %v880 = vmul.f32 %v879, %v763
  %v881 = vsel %vm291, %v764, %v859
  %vm882 = vcmask 15360
  %v883 = vsel %vm882, %v881, %v880
  %vm884 = vcmask 16384
  %885 = vst.msk [vmem:[%s11] sm:$0x1] %vm884, %v883
  // Predicated region
  $region42: #{singular_trajectory_forward.1} parent=0 // pred_check
    _
  $region43: #{singular_trajectory_forward.1} parent=0 // pred_check_branch
    %887 = sbr.rel (0) target = $region45
  $region44: #{singular_trajectory_forward.1} parent=0 // pred_region
    _
  $region45: #{singular_trajectory_forward.1} parent=0 // pred_fallthru
    _
  // Predicated region
  $region46: #{singular_trajectory_forward.1} parent=0 // pred_check
    _
  $region47: #{singular_trajectory_forward.1} parent=0 // pred_check_branch
    %889 = sbr.rel (0) target = $region49
  $region48: #{singular_trajectory_forward.1} parent=0 // pred_region
    _
  $region49: #{singular_trajectory_forward.1} parent=0 // pred_fallthru
    _
  // Predicated region
  $region50: #{singular_trajectory_forward.1} parent=0 // pred_check
    _
  $region51: #{singular_trajectory_forward.1} parent=0 // pred_check_branch
    %891 = sbr.rel (0) target = $region53
  $region52: #{singular_trajectory_forward.1} parent=0 // pred_region
    _
  $region53: #{singular_trajectory_forward.1} parent=0 // pred_fallthru
    _
  // Predicated region
  $region54: #{singular_trajectory_forward.1} parent=0 // pred_check
    _
  $region55: #{singular_trajectory_forward.1} parent=0 // pred_check_branch
    %893 = sbr.rel (0) target = $region57
  $region56: #{singular_trajectory_forward.1} parent=0 // pred_region
    _
  $region57: #{singular_trajectory_forward.1} parent=0 // pred_fallthru
    _

</llo_original>
